<compile_context>
chip_gen: v5e
topology: v5e:2x2
jax: 0.10.0
libtpu: 0.0.40
codegen_flags: <defaults>
</compile_context>

<pallas_src>
import math

import jax
import jax.numpy as jnp
from jax.experimental import pallas as pl
from jax.experimental.pallas import tpu as pltpu

HIDDEN = 64
SEQ_LEN = 5  # implied by FC = Linear(64 * 5, output_size)


def _round_up(x, m):
    return ((x + m - 1) // m) * m


def gru_fc_kernel(x_ref, wir_ref, wiz_ref, win_ref, whr_ref, whz_ref, whn_ref,
                  bgi_ref, bhn_ref, fcw_ref, fcb_ref, o_ref):
    """One batch tile of the whole forward pass.

    x_ref:   (T, TB, D_in)  time-major batch tile (compute dtype, e.g. bf16)
    wi*_ref: (D_in, H)      per-gate input weights (r, z, n), pre-transposed
    wh*_ref: (H, H)         per-gate recurrent weights, pre-transposed
    bgi_ref: (3, H)         f32, rows = [b_ih_r+b_hh_r, b_ih_z+b_hh_z, b_ih_n]
    bhn_ref: (1, H)         f32, b_hh_n (must stay inside the r* term)
    fcw_ref: (T, H, OUTP)   FC weight split per timestep, out-dim padded to 128
    fcb_ref: (1, OUTP)      f32 FC bias (padded)
    o_ref:   (TB, OUTP)     f32 output tile
    """
    T, TB, D_in = x_ref.shape
    H = whr_ref.shape[0]
    OUTP = o_ref.shape[1]
    cdt = wir_ref.dtype  # matmul operand dtype (bf16 or f32)

    # Time-major flatten: rows [t*TB, (t+1)*TB) belong to timestep t.
    # TB is a multiple of 16 -> this is a layout-trivial shape cast.
    x2 = x_ref[...].reshape(T * TB, D_in)

    b_r = bgi_ref[0:1, :]
    b_z = bgi_ref[1:2, :]
    b_n = bgi_ref[2:3, :]
    b_hn = bhn_ref[...]

    # Hoisted input projections: one matmul per gate for ALL timesteps
    # (bias added once here; nothing input-side remains in the serial loop).
    gi_r = jnp.dot(x2, wir_ref[...], preferred_element_type=jnp.float32) + b_r
    gi_z = jnp.dot(x2, wiz_ref[...], preferred_element_type=jnp.float32) + b_z
    gi_n = jnp.dot(x2, win_ref[...], preferred_element_type=jnp.float32) + b_n

    whr = whr_ref[...]
    whz = whz_ref[...]
    whn = whn_ref[...]

    h = jnp.zeros((TB, H), jnp.float32)
    acc = jnp.zeros((TB, OUTP), jnp.float32)
    for t in range(T):  # T == 5, static unroll
        lo, hi = t * TB, (t + 1) * TB
        if t == 0:
            # h0 == 0: the recurrent matmuls vanish (gh_* = 0, gh_n bias = b_hn).
            r = jax.nn.sigmoid(gi_r[lo:hi, :])
            z = jax.nn.sigmoid(gi_z[lo:hi, :])
            n = jnp.tanh(gi_n[lo:hi, :] + r * b_hn)
            h = (1.0 - z) * n
        else:
            hc = h.astype(cdt)
            gh_r = jnp.dot(hc, whr, preferred_element_type=jnp.float32)
            gh_z = jnp.dot(hc, whz, preferred_element_type=jnp.float32)
            gh_n = jnp.dot(hc, whn, preferred_element_type=jnp.float32) + b_hn
            r = jax.nn.sigmoid(gi_r[lo:hi, :] + gh_r)
            z = jax.nn.sigmoid(gi_z[lo:hi, :] + gh_z)
            n = jnp.tanh(gi_n[lo:hi, :] + r * gh_n)
            h = (1.0 - z) * n + z * h
        # Fold the FC into the loop: acc += sigmoid(h_t) @ FC_block_t  (no (B, T*H) concat).
        acc = acc + jnp.dot(jax.nn.sigmoid(h).astype(cdt), fcw_ref[t],
                            preferred_element_type=jnp.float32)

    o_ref[...] = acc + fcb_ref[...]


def gru_forward(x, params, *, compute_dtype=jnp.bfloat16, batch_tile=128):
    """x: (B, T, D_in) float32.  Returns (B, output_size) float32."""
    B, T, D_in = x.shape
    assert T == SEQ_LEN, "FC layer fixes the sequence length to 5"
    H = HIDDEN
    w_ih, w_hh, b_ih, b_hh, fc_w, fc_b = (
        params["w_ih"], params["w_hh"], params["b_ih"], params["b_hh"],
        params["fc_w"], params["fc_b"])
    out_size = fc_w.shape[0]
    out_pad = _round_up(out_size, 128)          # lane-dense output slab

    # Batch tiling: second-minor alignment of 16 covers both f32 and bf16 tiles.
    TB = min(_round_up(B, 16), _round_up(batch_tile, 16))
    B_full = _round_up(B, TB)                   # pad so the grid divides evenly
    grid = (B_full // TB,)

    # --- glue: pad batch, go time-major, split weights per gate, fold biases ---
    x_p = jnp.pad(x.astype(jnp.float32), ((0, B_full - B), (0, 0), (0, 0)))
    x_tm = jnp.transpose(x_p, (1, 0, 2)).astype(compute_dtype)       # (T, B_full, D_in)

    wir_t = w_ih[0:H].T.astype(compute_dtype)          # (D_in, H)  gate r
    wiz_t = w_ih[H:2 * H].T.astype(compute_dtype)      # gate z
    win_t = w_ih[2 * H:3 * H].T.astype(compute_dtype)  # gate n
    whr_t = w_hh[0:H].T.astype(compute_dtype)          # (H, H)
    whz_t = w_hh[H:2 * H].T.astype(compute_dtype)
    whn_t = w_hh[2 * H:3 * H].T.astype(compute_dtype)

    bgi = jnp.stack([b_ih[0:H] + b_hh[0:H],
                     b_ih[H:2 * H] + b_hh[H:2 * H],
                     b_ih[2 * H:3 * H]], axis=0).astype(jnp.float32)   # (3, H)
    bhn = b_hh[2 * H:3 * H].reshape(1, H).astype(jnp.float32)          # (1, H)

    fcw_blocks = fc_w.T.reshape(T, H, out_size)                        # (T, H, out)
    fcw_blocks = jnp.pad(fcw_blocks,
                         ((0, 0), (0, 0), (0, out_pad - out_size))).astype(compute_dtype)
    fcb = jnp.pad(fc_b, (0, out_pad - out_size)).reshape(1, out_pad).astype(jnp.float32)

    full2d = lambda b: (0, 0)
    out = pl.pallas_call(
        gru_fc_kernel,
        out_shape=jax.ShapeDtypeStruct((B_full, out_pad), jnp.float32),
        grid=grid,
        in_specs=[
            pl.BlockSpec((T, TB, D_in), lambda b: (0, b, 0)),   # x: streamed per batch tile
            pl.BlockSpec((D_in, H), full2d),                    # w_ih_r^T
            pl.BlockSpec((D_in, H), full2d),                    # w_ih_z^T
            pl.BlockSpec((D_in, H), full2d),                    # w_ih_n^T
            pl.BlockSpec((H, H), full2d),                       # w_hh_r^T
            pl.BlockSpec((H, H), full2d),                       # w_hh_z^T
            pl.BlockSpec((H, H), full2d),                       # w_hh_n^T
            pl.BlockSpec((3, H), full2d),                       # folded gi biases
            pl.BlockSpec((1, H), full2d),                       # b_hh_n
            pl.BlockSpec((T, H, out_pad), lambda b: (0, 0, 0)), # FC blocks
            pl.BlockSpec((1, out_pad), full2d),                 # FC bias
        ],
        out_specs=pl.BlockSpec((TB, out_pad), lambda b: (b, 0)),
        compiler_params=pltpu.CompilerParams(
            dimension_semantics=("parallel",)),                 # megacore-shard batch tiles
    )(x_tm, wir_t, wiz_t, win_t, whr_t, whz_t, whn_t, bgi, bhn, fcw_blocks, fcb)

    return out[:B, :out_size]


def init_params(key, input_size, output_size):
    """Shapes/init matching PyTorch defaults (uniform(-1/sqrt(fan), 1/sqrt(fan)))."""
    ks = jax.random.split(key, 6)
    H = HIDDEN
    k_gru = 1.0 / math.sqrt(H)
    k_fc = 1.0 / math.sqrt(H * SEQ_LEN)
    u = lambda k, shape, bound: jax.random.uniform(
        k, shape, jnp.float32, minval=-bound, maxval=bound)
    return {
        "w_ih": u(ks[0], (3 * H, input_size), k_gru),   # gate order [r, z, n]
        "w_hh": u(ks[1], (3 * H, H), k_gru),
        "b_ih": u(ks[2], (3 * H,), k_gru),
        "b_hh": u(ks[3], (3 * H,), k_gru),
        "fc_w": u(ks[4], (output_size, H * SEQ_LEN), k_fc),
        "fc_b": u(ks[5], (output_size,), k_fc),
    }


def gru_forward_ref(x, params):
    """Pure-JAX f32 reference mirroring torch.nn.GRU + view + sigmoid + Linear."""
    w_ih, w_hh = params["w_ih"], params["w_hh"]
    b_ih, b_hh = params["b_ih"], params["b_hh"]
    B, T, _ = x.shape
    H = HIDDEN
    h = jnp.zeros((B, H), jnp.float32)
    outs = []
    for t in range(T):
        gi = x[:, t, :] @ w_ih.T + b_ih
        gh = h @ w_hh.T + b_hh
        r = jax.nn.sigmoid(gi[:, :H] + gh[:, :H])
        z = jax.nn.sigmoid(gi[:, H:2 * H] + gh[:, H:2 * H])
        n = jnp.tanh(gi[:, 2 * H:] + r * gh[:, 2 * H:])
        h = (1.0 - z) * n + z * h
        outs.append(h)
    flat = jnp.concatenate(outs, axis=1)
    return jax.nn.sigmoid(flat) @ params["fc_w"].T + params["fc_b"]


if __name__ == "__main__":
    key = jax.random.PRNGKey(0)
    k_x, k_p, k_x2 = jax.random.split(key, 3)

    B, T, input_size, output_size = 2, SEQ_LEN, 16, 10
    x = jax.random.normal(k_x, (B, T, input_size), jnp.float32)
    params = init_params(k_p, input_size, output_size)
    ref = gru_forward_ref(x, params)

    # bf16-operand fast path (loose tolerance vs the f32 reference).
    out_bf16 = jax.block_until_ready(gru_forward(x, params, compute_dtype=jnp.bfloat16))
    assert out_bf16.shape == (B, output_size)
    assert jnp.allclose(out_bf16, ref, atol=5e-2, rtol=5e-2), "bf16 kernel mismatch"

    # f32 path (tight tolerance) to pin exact semantics.
    out_f32 = jax.block_until_ready(gru_forward(x, params, compute_dtype=jnp.float32))
    assert jnp.allclose(out_f32, ref, atol=1e-4, rtol=1e-4), "f32 kernel mismatch"

    # Larger batch exercising padding + a multi-tile grid (batch_tile=32 -> grid of 4).
    B2 = 100
    x2 = jax.random.normal(k_x2, (B2, T, input_size), jnp.float32)
    ref2 = gru_forward_ref(x2, params)
    out2 = jax.block_until_ready(
        gru_forward(x2, params, compute_dtype=jnp.bfloat16, batch_tile=32))
    assert out2.shape == (B2, output_size)
    assert jnp.allclose(out2, ref2, atol=5e-2, rtol=5e-2), "tiled kernel mismatch"

    print("KERNEL_OK")
</pallas_src>

<mosaic_0001>
module attributes {stable_mosaic.version = 11 : i64} {
  func.func @gru_fc_kernel(%arg0: i32, %arg1: memref<5x16x16xbf16, #tpu.memory_space<vmem>>, %arg2: memref<16x64xbf16, #tpu.memory_space<vmem>>, %arg3: memref<16x64xbf16, #tpu.memory_space<vmem>>, %arg4: memref<16x64xbf16, #tpu.memory_space<vmem>>, %arg5: memref<64x64xbf16, #tpu.memory_space<vmem>>, %arg6: memref<64x64xbf16, #tpu.memory_space<vmem>>, %arg7: memref<64x64xbf16, #tpu.memory_space<vmem>>, %arg8: memref<3x64xf32, #tpu.memory_space<vmem>>, %arg9: memref<1x64xf32, #tpu.memory_space<vmem>>, %arg10: memref<5x64x128xbf16, #tpu.memory_space<vmem>>, %arg11: memref<1x128xf32, #tpu.memory_space<vmem>>, %arg12: memref<16x128xf32, #tpu.memory_space<vmem>>) attributes {dimension_semantics = [#tpu.dimension_semantics<parallel>], iteration_bounds = array<i64: 1>, scalar_prefetch = 0 : i64, scratch_operands = 0 : i64, tpu.core_type = #tpu.core_type<tc>, window_params = [{transform_indices = @transform_0, window_bounds = array<i64: 5, 16, 16>}, {pipeline_mode = #tpu.pipeline_mode<synchronous>, transform_indices = @transform_1, window_bounds = array<i64: 16, 64>}, {pipeline_mode = #tpu.pipeline_mode<synchronous>, transform_indices = @transform_2, window_bounds = array<i64: 16, 64>}, {pipeline_mode = #tpu.pipeline_mode<synchronous>, transform_indices = @transform_3, window_bounds = array<i64: 16, 64>}, {pipeline_mode = #tpu.pipeline_mode<synchronous>, transform_indices = @transform_4, window_bounds = array<i64: 64, 64>}, {pipeline_mode = #tpu.pipeline_mode<synchronous>, transform_indices = @transform_5, window_bounds = array<i64: 64, 64>}, {pipeline_mode = #tpu.pipeline_mode<synchronous>, transform_indices = @transform_6, window_bounds = array<i64: 64, 64>}, {pipeline_mode = #tpu.pipeline_mode<synchronous>, transform_indices = @transform_7, window_bounds = array<i64: 3, 64>}, {pipeline_mode = #tpu.pipeline_mode<synchronous>, transform_indices = @transform_8, window_bounds = array<i64: 1, 64>}, {pipeline_mode = #tpu.pipeline_mode<synchronous>, transform_indices = @transform_9, window_bounds = array<i64: 5, 64, 128>}, {pipeline_mode = #tpu.pipeline_mode<synchronous>, transform_indices = @transform_10, window_bounds = array<i64: 1, 128>}, {transform_indices = @transform_11, window_bounds = array<i64: 16, 128>}]} {
    %c0 = arith.constant 0 : index
    %c0_0 = arith.constant 0 : index
    %c0_1 = arith.constant 0 : index
    %0 = vector.load %arg1[%c0, %c0_0, %c0_1] : memref<5x16x16xbf16, #tpu.memory_space<vmem>>, vector<5x16x16xbf16>
    %1 = vector.shape_cast %0 : vector<5x16x16xbf16> to vector<80x16xbf16>
    %c0_2 = arith.constant 0 : index
    %c0_3 = arith.constant 0 : index
    %2 = vector.load %arg8[%c0_2, %c0_3] : memref<3x64xf32, #tpu.memory_space<vmem>>, vector<1x64xf32>
    %c1 = arith.constant 1 : index
    %c0_4 = arith.constant 0 : index
    %3 = vector.load %arg8[%c1, %c0_4] : memref<3x64xf32, #tpu.memory_space<vmem>>, vector<1x64xf32>
    %c2 = arith.constant 2 : index
    %c0_5 = arith.constant 0 : index
    %4 = vector.load %arg8[%c2, %c0_5] : memref<3x64xf32, #tpu.memory_space<vmem>>, vector<1x64xf32>
    %c0_6 = arith.constant 0 : index
    %c0_7 = arith.constant 0 : index
    %5 = vector.load %arg9[%c0_6, %c0_7] : memref<1x64xf32, #tpu.memory_space<vmem>>, vector<1x64xf32>
    %c0_8 = arith.constant 0 : index
    %c0_9 = arith.constant 0 : index
    %6 = vector.load %arg2[%c0_8, %c0_9] : memref<16x64xbf16, #tpu.memory_space<vmem>>, vector<16x64xbf16>
    %cst = arith.constant dense<0.000000e+00> : vector<80x64xf32>
    %7 = tpu.matmul %1, %6, %cst {dimension_numbers = #tpu.dot_dimension_numbers<[1], [0], [0], [1], [0, 0, 1, 1], [], []>} : vector<80x16xbf16>, vector<16x64xbf16>, vector<80x64xf32> -> vector<80x64xf32>
    %8 = vector.broadcast %2 : vector<1x64xf32> to vector<80x64xf32>
    %9 = arith.addf %7, %8 : vector<80x64xf32>
    %c0_10 = arith.constant 0 : index
    %c0_11 = arith.constant 0 : index
    %10 = vector.load %arg3[%c0_10, %c0_11] : memref<16x64xbf16, #tpu.memory_space<vmem>>, vector<16x64xbf16>
    %cst_12 = arith.constant dense<0.000000e+00> : vector<80x64xf32>
    %11 = tpu.matmul %1, %10, %cst_12 {dimension_numbers = #tpu.dot_dimension_numbers<[1], [0], [0], [1], [0, 0, 1, 1], [], []>} : vector<80x16xbf16>, vector<16x64xbf16>, vector<80x64xf32> -> vector<80x64xf32>
    %12 = vector.broadcast %3 : vector<1x64xf32> to vector<80x64xf32>
    %13 = arith.addf %11, %12 : vector<80x64xf32>
    %c0_13 = arith.constant 0 : index
    %c0_14 = arith.constant 0 : index
    %14 = vector.load %arg4[%c0_13, %c0_14] : memref<16x64xbf16, #tpu.memory_space<vmem>>, vector<16x64xbf16>
    %cst_15 = arith.constant dense<0.000000e+00> : vector<80x64xf32>
    %15 = tpu.matmul %1, %14, %cst_15 {dimension_numbers = #tpu.dot_dimension_numbers<[1], [0], [0], [1], [0, 0, 1, 1], [], []>} : vector<80x16xbf16>, vector<16x64xbf16>, vector<80x64xf32> -> vector<80x64xf32>
    %16 = vector.broadcast %4 : vector<1x64xf32> to vector<80x64xf32>
    %17 = arith.addf %15, %16 : vector<80x64xf32>
    %c0_16 = arith.constant 0 : index
    %c0_17 = arith.constant 0 : index
    %18 = vector.load %arg5[%c0_16, %c0_17] : memref<64x64xbf16, #tpu.memory_space<vmem>>, vector<64x64xbf16>
    %c0_18 = arith.constant 0 : index
    %c0_19 = arith.constant 0 : index
    %19 = vector.load %arg6[%c0_18, %c0_19] : memref<64x64xbf16, #tpu.memory_space<vmem>>, vector<64x64xbf16>
    %c0_20 = arith.constant 0 : index
    %c0_21 = arith.constant 0 : index
    %20 = vector.load %arg7[%c0_20, %c0_21] : memref<64x64xbf16, #tpu.memory_space<vmem>>, vector<64x64xbf16>
    %cst_22 = arith.constant 0.000000e+00 : f32
    %21 = vector.broadcast %cst_22 : f32 to vector<16x128xf32>
    %22 = vector.extract_strided_slice %9 {offsets = [0, 0], sizes = [16, 64], strides = [1, 1]} : vector<80x64xf32> to vector<16x64xf32>
    %23 = arith.negf %22 : vector<16x64xf32>
    %24 = math.exp %23 : vector<16x64xf32>
    %cst_23 = arith.constant 1.000000e+00 : f32
    %25 = vector.broadcast %cst_23 : f32 to vector<16x64xf32>
    %26 = arith.addf %25, %24 : vector<16x64xf32>
    %27 = arith.divf %25, %26 : vector<16x64xf32>
    %28 = vector.extract_strided_slice %13 {offsets = [0, 0], sizes = [16, 64], strides = [1, 1]} : vector<80x64xf32> to vector<16x64xf32>
    %29 = arith.negf %28 : vector<16x64xf32>
    %30 = math.exp %29 : vector<16x64xf32>
    %cst_24 = arith.constant 1.000000e+00 : f32
    %31 = vector.broadcast %cst_24 : f32 to vector<16x64xf32>
    %32 = arith.addf %31, %30 : vector<16x64xf32>
    %33 = arith.divf %31, %32 : vector<16x64xf32>
    %34 = vector.extract_strided_slice %17 {offsets = [0, 0], sizes = [16, 64], strides = [1, 1]} : vector<80x64xf32> to vector<16x64xf32>
    %35 = vector.broadcast %5 : vector<1x64xf32> to vector<16x64xf32>
    %36 = arith.mulf %27, %35 : vector<16x64xf32>
    %37 = arith.addf %34, %36 : vector<16x64xf32>
    %38 = math.tanh %37 : vector<16x64xf32>
    %cst_25 = arith.constant 1.000000e+00 : f32
    %39 = vector.broadcast %cst_25 : f32 to vector<16x64xf32>
    %40 = arith.subf %39, %33 : vector<16x64xf32>
    %41 = arith.mulf %40, %38 : vector<16x64xf32>
    %42 = arith.negf %41 : vector<16x64xf32>
    %43 = math.exp %42 : vector<16x64xf32>
    %cst_26 = arith.constant 1.000000e+00 : f32
    %44 = vector.broadcast %cst_26 : f32 to vector<16x64xf32>
    %45 = arith.addf %44, %43 : vector<16x64xf32>
    %46 = arith.divf %44, %45 : vector<16x64xf32>
    %47 = arith.truncf %46 : vector<16x64xf32> to vector<16x64xbf16>
    %c0_27 = arith.constant 0 : index
    %c0_28 = arith.constant 0 : index
    %c0_29 = arith.constant 0 : index
    %48 = vector.load %arg10[%c0_27, %c0_28, %c0_29] : memref<5x64x128xbf16, #tpu.memory_space<vmem>>, vector<1x64x128xbf16>
    %49 = vector.shape_cast %48 : vector<1x64x128xbf16> to vector<64x128xbf16>
    %cst_30 = arith.constant dense<0.000000e+00> : vector<16x128xf32>
    %50 = tpu.matmul %47, %49, %cst_30 {dimension_numbers = #tpu.dot_dimension_numbers<[1], [0], [0], [1], [0, 0, 1, 1], [], []>} : vector<16x64xbf16>, vector<64x128xbf16>, vector<16x128xf32> -> vector<16x128xf32>
    %51 = arith.addf %21, %50 : vector<16x128xf32>
    %52 = arith.truncf %41 : vector<16x64xf32> to vector<16x64xbf16>
    %cst_31 = arith.constant dense<0.000000e+00> : vector<16x64xf32>
    %53 = tpu.matmul %52, %18, %cst_31 {dimension_numbers = #tpu.dot_dimension_numbers<[1], [0], [0], [1], [0, 0, 1, 1], [], []>} : vector<16x64xbf16>, vector<64x64xbf16>, vector<16x64xf32> -> vector<16x64xf32>
    %cst_32 = arith.constant dense<0.000000e+00> : vector<16x64xf32>
    %54 = tpu.matmul %52, %19, %cst_32 {dimension_numbers = #tpu.dot_dimension_numbers<[1], [0], [0], [1], [0, 0, 1, 1], [], []>} : vector<16x64xbf16>, vector<64x64xbf16>, vector<16x64xf32> -> vector<16x64xf32>
    %cst_33 = arith.constant dense<0.000000e+00> : vector<16x64xf32>
    %55 = tpu.matmul %52, %20, %cst_33 {dimension_numbers = #tpu.dot_dimension_numbers<[1], [0], [0], [1], [0, 0, 1, 1], [], []>} : vector<16x64xbf16>, vector<64x64xbf16>, vector<16x64xf32> -> vector<16x64xf32>
    %56 = vector.broadcast %5 : vector<1x64xf32> to vector<16x64xf32>
    %57 = arith.addf %55, %56 : vector<16x64xf32>
    %58 = vector.extract_strided_slice %9 {offsets = [16, 0], sizes = [16, 64], strides = [1, 1]} : vector<80x64xf32> to vector<16x64xf32>
    %59 = arith.addf %58, %53 : vector<16x64xf32>
    %60 = arith.negf %59 : vector<16x64xf32>
    %61 = math.exp %60 : vector<16x64xf32>
    %cst_34 = arith.constant 1.000000e+00 : f32
    %62 = vector.broadcast %cst_34 : f32 to vector<16x64xf32>
    %63 = arith.addf %62, %61 : vector<16x64xf32>
    %64 = arith.divf %62, %63 : vector<16x64xf32>
    %65 = vector.extract_strided_slice %13 {offsets = [16, 0], sizes = [16, 64], strides = [1, 1]} : vector<80x64xf32> to vector<16x64xf32>
    %66 = arith.addf %65, %54 : vector<16x64xf32>
    %67 = arith.negf %66 : vector<16x64xf32>
    %68 = math.exp %67 : vector<16x64xf32>
    %cst_35 = arith.constant 1.000000e+00 : f32
    %69 = vector.broadcast %cst_35 : f32 to vector<16x64xf32>
    %70 = arith.addf %69, %68 : vector<16x64xf32>
    %71 = arith.divf %69, %70 : vector<16x64xf32>
    %72 = vector.extract_strided_slice %17 {offsets = [16, 0], sizes = [16, 64], strides = [1, 1]} : vector<80x64xf32> to vector<16x64xf32>
    %73 = arith.mulf %64, %57 : vector<16x64xf32>
    %74 = arith.addf %72, %73 : vector<16x64xf32>
    %75 = math.tanh %74 : vector<16x64xf32>
    %cst_36 = arith.constant 1.000000e+00 : f32
    %76 = vector.broadcast %cst_36 : f32 to vector<16x64xf32>
    %77 = arith.subf %76, %71 : vector<16x64xf32>
    %78 = arith.mulf %77, %75 : vector<16x64xf32>
    %79 = arith.mulf %71, %41 : vector<16x64xf32>
    %80 = arith.addf %78, %79 : vector<16x64xf32>
    %81 = arith.negf %80 : vector<16x64xf32>
    %82 = math.exp %81 : vector<16x64xf32>
    %cst_37 = arith.constant 1.000000e+00 : f32
    %83 = vector.broadcast %cst_37 : f32 to vector<16x64xf32>
    %84 = arith.addf %83, %82 : vector<16x64xf32>
    %85 = arith.divf %83, %84 : vector<16x64xf32>
    %86 = arith.truncf %85 : vector<16x64xf32> to vector<16x64xbf16>
    %c1_38 = arith.constant 1 : index
    %c0_39 = arith.constant 0 : index
    %c0_40 = arith.constant 0 : index
    %87 = vector.load %arg10[%c1_38, %c0_39, %c0_40] : memref<5x64x128xbf16, #tpu.memory_space<vmem>>, vector<1x64x128xbf16>
    %88 = vector.shape_cast %87 : vector<1x64x128xbf16> to vector<64x128xbf16>
    %cst_41 = arith.constant dense<0.000000e+00> : vector<16x128xf32>
    %89 = tpu.matmul %86, %88, %cst_41 {dimension_numbers = #tpu.dot_dimension_numbers<[1], [0], [0], [1], [0, 0, 1, 1], [], []>} : vector<16x64xbf16>, vector<64x128xbf16>, vector<16x128xf32> -> vector<16x128xf32>
    %90 = arith.addf %51, %89 : vector<16x128xf32>
    %91 = arith.truncf %80 : vector<16x64xf32> to vector<16x64xbf16>
    %cst_42 = arith.constant dense<0.000000e+00> : vector<16x64xf32>
    %92 = tpu.matmul %91, %18, %cst_42 {dimension_numbers = #tpu.dot_dimension_numbers<[1], [0], [0], [1], [0, 0, 1, 1], [], []>} : vector<16x64xbf16>, vector<64x64xbf16>, vector<16x64xf32> -> vector<16x64xf32>
    %cst_43 = arith.constant dense<0.000000e+00> : vector<16x64xf32>
    %93 = tpu.matmul %91, %19, %cst_43 {dimension_numbers = #tpu.dot_dimension_numbers<[1], [0], [0], [1], [0, 0, 1, 1], [], []>} : vector<16x64xbf16>, vector<64x64xbf16>, vector<16x64xf32> -> vector<16x64xf32>
    %cst_44 = arith.constant dense<0.000000e+00> : vector<16x64xf32>
    %94 = tpu.matmul %91, %20, %cst_44 {dimension_numbers = #tpu.dot_dimension_numbers<[1], [0], [0], [1], [0, 0, 1, 1], [], []>} : vector<16x64xbf16>, vector<64x64xbf16>, vector<16x64xf32> -> vector<16x64xf32>
    %95 = vector.broadcast %5 : vector<1x64xf32> to vector<16x64xf32>
    %96 = arith.addf %94, %95 : vector<16x64xf32>
    %97 = vector.extract_strided_slice %9 {offsets = [32, 0], sizes = [16, 64], strides = [1, 1]} : vector<80x64xf32> to vector<16x64xf32>
    %98 = arith.addf %97, %92 : vector<16x64xf32>
    %99 = arith.negf %98 : vector<16x64xf32>
    %100 = math.exp %99 : vector<16x64xf32>
    %cst_45 = arith.constant 1.000000e+00 : f32
    %101 = vector.broadcast %cst_45 : f32 to vector<16x64xf32>
    %102 = arith.addf %101, %100 : vector<16x64xf32>
    %103 = arith.divf %101, %102 : vector<16x64xf32>
    %104 = vector.extract_strided_slice %13 {offsets = [32, 0], sizes = [16, 64], strides = [1, 1]} : vector<80x64xf32> to vector<16x64xf32>
    %105 = arith.addf %104, %93 : vector<16x64xf32>
    %106 = arith.negf %105 : vector<16x64xf32>
    %107 = math.exp %106 : vector<16x64xf32>
    %cst_46 = arith.constant 1.000000e+00 : f32
    %108 = vector.broadcast %cst_46 : f32 to vector<16x64xf32>
    %109 = arith.addf %108, %107 : vector<16x64xf32>
    %110 = arith.divf %108, %109 : vector<16x64xf32>
    %111 = vector.extract_strided_slice %17 {offsets = [32, 0], sizes = [16, 64], strides = [1, 1]} : vector<80x64xf32> to vector<16x64xf32>
    %112 = arith.mulf %103, %96 : vector<16x64xf32>
    %113 = arith.addf %111, %112 : vector<16x64xf32>
    %114 = math.tanh %113 : vector<16x64xf32>
    %cst_47 = arith.constant 1.000000e+00 : f32
    %115 = vector.broadcast %cst_47 : f32 to vector<16x64xf32>
    %116 = arith.subf %115, %110 : vector<16x64xf32>
    %117 = arith.mulf %116, %114 : vector<16x64xf32>
    %118 = arith.mulf %110, %80 : vector<16x64xf32>
    %119 = arith.addf %117, %118 : vector<16x64xf32>
    %120 = arith.negf %119 : vector<16x64xf32>
    %121 = math.exp %120 : vector<16x64xf32>
    %cst_48 = arith.constant 1.000000e+00 : f32
    %122 = vector.broadcast %cst_48 : f32 to vector<16x64xf32>
    %123 = arith.addf %122, %121 : vector<16x64xf32>
    %124 = arith.divf %122, %123 : vector<16x64xf32>
    %125 = arith.truncf %124 : vector<16x64xf32> to vector<16x64xbf16>
    %c2_49 = arith.constant 2 : index
    %c0_50 = arith.constant 0 : index
    %c0_51 = arith.constant 0 : index
    %126 = vector.load %arg10[%c2_49, %c0_50, %c0_51] : memref<5x64x128xbf16, #tpu.memory_space<vmem>>, vector<1x64x128xbf16>
    %127 = vector.shape_cast %126 : vector<1x64x128xbf16> to vector<64x128xbf16>
    %cst_52 = arith.constant dense<0.000000e+00> : vector<16x128xf32>
    %128 = tpu.matmul %125, %127, %cst_52 {dimension_numbers = #tpu.dot_dimension_numbers<[1], [0], [0], [1], [0, 0, 1, 1], [], []>} : vector<16x64xbf16>, vector<64x128xbf16>, vector<16x128xf32> -> vector<16x128xf32>
    %129 = arith.addf %90, %128 : vector<16x128xf32>
    %130 = arith.truncf %119 : vector<16x64xf32> to vector<16x64xbf16>
    %cst_53 = arith.constant dense<0.000000e+00> : vector<16x64xf32>
    %131 = tpu.matmul %130, %18, %cst_53 {dimension_numbers = #tpu.dot_dimension_numbers<[1], [0], [0], [1], [0, 0, 1, 1], [], []>} : vector<16x64xbf16>, vector<64x64xbf16>, vector<16x64xf32> -> vector<16x64xf32>
    %cst_54 = arith.constant dense<0.000000e+00> : vector<16x64xf32>
    %132 = tpu.matmul %130, %19, %cst_54 {dimension_numbers = #tpu.dot_dimension_numbers<[1], [0], [0], [1], [0, 0, 1, 1], [], []>} : vector<16x64xbf16>, vector<64x64xbf16>, vector<16x64xf32> -> vector<16x64xf32>
    %cst_55 = arith.constant dense<0.000000e+00> : vector<16x64xf32>
    %133 = tpu.matmul %130, %20, %cst_55 {dimension_numbers = #tpu.dot_dimension_numbers<[1], [0], [0], [1], [0, 0, 1, 1], [], []>} : vector<16x64xbf16>, vector<64x64xbf16>, vector<16x64xf32> -> vector<16x64xf32>
    %134 = vector.broadcast %5 : vector<1x64xf32> to vector<16x64xf32>
    %135 = arith.addf %133, %134 : vector<16x64xf32>
    %136 = vector.extract_strided_slice %9 {offsets = [48, 0], sizes = [16, 64], strides = [1, 1]} : vector<80x64xf32> to vector<16x64xf32>
    %137 = arith.addf %136, %131 : vector<16x64xf32>
    %138 = arith.negf %137 : vector<16x64xf32>
    %139 = math.exp %138 : vector<16x64xf32>
    %cst_56 = arith.constant 1.000000e+00 : f32
    %140 = vector.broadcast %cst_56 : f32 to vector<16x64xf32>
    %141 = arith.addf %140, %139 : vector<16x64xf32>
    %142 = arith.divf %140, %141 : vector<16x64xf32>
    %143 = vector.extract_strided_slice %13 {offsets = [48, 0], sizes = [16, 64], strides = [1, 1]} : vector<80x64xf32> to vector<16x64xf32>
    %144 = arith.addf %143, %132 : vector<16x64xf32>
    %145 = arith.negf %144 : vector<16x64xf32>
    %146 = math.exp %145 : vector<16x64xf32>
    %cst_57 = arith.constant 1.000000e+00 : f32
    %147 = vector.broadcast %cst_57 : f32 to vector<16x64xf32>
    %148 = arith.addf %147, %146 : vector<16x64xf32>
    %149 = arith.divf %147, %148 : vector<16x64xf32>
    %150 = vector.extract_strided_slice %17 {offsets = [48, 0], sizes = [16, 64], strides = [1, 1]} : vector<80x64xf32> to vector<16x64xf32>
    %151 = arith.mulf %142, %135 : vector<16x64xf32>
    %152 = arith.addf %150, %151 : vector<16x64xf32>
    %153 = math.tanh %152 : vector<16x64xf32>
    %cst_58 = arith.constant 1.000000e+00 : f32
    %154 = vector.broadcast %cst_58 : f32 to vector<16x64xf32>
    %155 = arith.subf %154, %149 : vector<16x64xf32>
    %156 = arith.mulf %155, %153 : vector<16x64xf32>
    %157 = arith.mulf %149, %119 : vector<16x64xf32>
    %158 = arith.addf %156, %157 : vector<16x64xf32>
    %159 = arith.negf %158 : vector<16x64xf32>
    %160 = math.exp %159 : vector<16x64xf32>
    %cst_59 = arith.constant 1.000000e+00 : f32
    %161 = vector.broadcast %cst_59 : f32 to vector<16x64xf32>
    %162 = arith.addf %161, %160 : vector<16x64xf32>
    %163 = arith.divf %161, %162 : vector<16x64xf32>
    %164 = arith.truncf %163 : vector<16x64xf32> to vector<16x64xbf16>
    %c3 = arith.constant 3 : index
    %c0_60 = arith.constant 0 : index
    %c0_61 = arith.constant 0 : index
    %165 = vector.load %arg10[%c3, %c0_60, %c0_61] : memref<5x64x128xbf16, #tpu.memory_space<vmem>>, vector<1x64x128xbf16>
    %166 = vector.shape_cast %165 : vector<1x64x128xbf16> to vector<64x128xbf16>
    %cst_62 = arith.constant dense<0.000000e+00> : vector<16x128xf32>
    %167 = tpu.matmul %164, %166, %cst_62 {dimension_numbers = #tpu.dot_dimension_numbers<[1], [0], [0], [1], [0, 0, 1, 1], [], []>} : vector<16x64xbf16>, vector<64x128xbf16>, vector<16x128xf32> -> vector<16x128xf32>
    %168 = arith.addf %129, %167 : vector<16x128xf32>
    %169 = arith.truncf %158 : vector<16x64xf32> to vector<16x64xbf16>
    %cst_63 = arith.constant dense<0.000000e+00> : vector<16x64xf32>
    %170 = tpu.matmul %169, %18, %cst_63 {dimension_numbers = #tpu.dot_dimension_numbers<[1], [0], [0], [1], [0, 0, 1, 1], [], []>} : vector<16x64xbf16>, vector<64x64xbf16>, vector<16x64xf32> -> vector<16x64xf32>
    %cst_64 = arith.constant dense<0.000000e+00> : vector<16x64xf32>
    %171 = tpu.matmul %169, %19, %cst_64 {dimension_numbers = #tpu.dot_dimension_numbers<[1], [0], [0], [1], [0, 0, 1, 1], [], []>} : vector<16x64xbf16>, vector<64x64xbf16>, vector<16x64xf32> -> vector<16x64xf32>
    %cst_65 = arith.constant dense<0.000000e+00> : vector<16x64xf32>
    %172 = tpu.matmul %169, %20, %cst_65 {dimension_numbers = #tpu.dot_dimension_numbers<[1], [0], [0], [1], [0, 0, 1, 1], [], []>} : vector<16x64xbf16>, vector<64x64xbf16>, vector<16x64xf32> -> vector<16x64xf32>
    %173 = vector.broadcast %5 : vector<1x64xf32> to vector<16x64xf32>
    %174 = arith.addf %172, %173 : vector<16x64xf32>
    %175 = vector.extract_strided_slice %9 {offsets = [64, 0], sizes = [16, 64], strides = [1, 1]} : vector<80x64xf32> to vector<16x64xf32>
    %176 = arith.addf %175, %170 : vector<16x64xf32>
    %177 = arith.negf %176 : vector<16x64xf32>
    %178 = math.exp %177 : vector<16x64xf32>
    %cst_66 = arith.constant 1.000000e+00 : f32
    %179 = vector.broadcast %cst_66 : f32 to vector<16x64xf32>
    %180 = arith.addf %179, %178 : vector<16x64xf32>
    %181 = arith.divf %179, %180 : vector<16x64xf32>
    %182 = vector.extract_strided_slice %13 {offsets = [64, 0], sizes = [16, 64], strides = [1, 1]} : vector<80x64xf32> to vector<16x64xf32>
    %183 = arith.addf %182, %171 : vector<16x64xf32>
    %184 = arith.negf %183 : vector<16x64xf32>
    %185 = math.exp %184 : vector<16x64xf32>
    %cst_67 = arith.constant 1.000000e+00 : f32
    %186 = vector.broadcast %cst_67 : f32 to vector<16x64xf32>
    %187 = arith.addf %186, %185 : vector<16x64xf32>
    %188 = arith.divf %186, %187 : vector<16x64xf32>
    %189 = vector.extract_strided_slice %17 {offsets = [64, 0], sizes = [16, 64], strides = [1, 1]} : vector<80x64xf32> to vector<16x64xf32>
    %190 = arith.mulf %181, %174 : vector<16x64xf32>
    %191 = arith.addf %189, %190 : vector<16x64xf32>
    %192 = math.tanh %191 : vector<16x64xf32>
    %cst_68 = arith.constant 1.000000e+00 : f32
    %193 = vector.broadcast %cst_68 : f32 to vector<16x64xf32>
    %194 = arith.subf %193, %188 : vector<16x64xf32>
    %195 = arith.mulf %194, %192 : vector<16x64xf32>
    %196 = arith.mulf %188, %158 : vector<16x64xf32>
    %197 = arith.addf %195, %196 : vector<16x64xf32>
    %198 = arith.negf %197 : vector<16x64xf32>
    %199 = math.exp %198 : vector<16x64xf32>
    %cst_69 = arith.constant 1.000000e+00 : f32
    %200 = vector.broadcast %cst_69 : f32 to vector<16x64xf32>
    %201 = arith.addf %200, %199 : vector<16x64xf32>
    %202 = arith.divf %200, %201 : vector<16x64xf32>
    %203 = arith.truncf %202 : vector<16x64xf32> to vector<16x64xbf16>
    %c4 = arith.constant 4 : index
    %c0_70 = arith.constant 0 : index
    %c0_71 = arith.constant 0 : index
    %204 = vector.load %arg10[%c4, %c0_70, %c0_71] : memref<5x64x128xbf16, #tpu.memory_space<vmem>>, vector<1x64x128xbf16>
    %205 = vector.shape_cast %204 : vector<1x64x128xbf16> to vector<64x128xbf16>
    %cst_72 = arith.constant dense<0.000000e+00> : vector<16x128xf32>
    %206 = tpu.matmul %203, %205, %cst_72 {dimension_numbers = #tpu.dot_dimension_numbers<[1], [0], [0], [1], [0, 0, 1, 1], [], []>} : vector<16x64xbf16>, vector<64x128xbf16>, vector<16x128xf32> -> vector<16x128xf32>
    %207 = arith.addf %168, %206 : vector<16x128xf32>
    %c0_73 = arith.constant 0 : index
    %c0_74 = arith.constant 0 : index
    %208 = vector.load %arg11[%c0_73, %c0_74] : memref<1x128xf32, #tpu.memory_space<vmem>>, vector<1x128xf32>
    %209 = vector.broadcast %208 : vector<1x128xf32> to vector<16x128xf32>
    %210 = arith.addf %207, %209 : vector<16x128xf32>
    %c0_75 = arith.constant 0 : index
    %c0_76 = arith.constant 0 : index
    %211 = vector.load %arg12[%c0_75, %c0_76] : memref<16x128xf32, #tpu.memory_space<vmem>>, vector<16x128xf32>
    tpu.vector_store %arg12[%c0_75, %c0_76], %210 {strides = array<i32>} : memref<16x128xf32, #tpu.memory_space<vmem>>, vector<16x128xf32>,
    return
  }
  func.func @transform_0(%arg0: i32) -> (i32, i32, i32) {
    %c0_i32 = arith.constant 0 : i32
    %c0_i32_0 = arith.constant 0 : i32
    %c0_i32_1 = arith.constant 0 : i32
    return %c0_i32, %arg0, %c0_i32_0 : i32, i32, i32
  }
  func.func @transform_1(%arg0: i32) -> (i32, i32) {
    %c0_i32 = arith.constant 0 : i32
    %c0_i32_0 = arith.constant 0 : i32
    %c0_i32_1 = arith.constant 0 : i32
    return %c0_i32, %c0_i32_0 : i32, i32
  }
  func.func @transform_2(%arg0: i32) -> (i32, i32) {
    %c0_i32 = arith.constant 0 : i32
    %c0_i32_0 = arith.constant 0 : i32
    %c0_i32_1 = arith.constant 0 : i32
    return %c0_i32, %c0_i32_0 : i32, i32
  }
  func.func @transform_3(%arg0: i32) -> (i32, i32) {
    %c0_i32 = arith.constant 0 : i32
    %c0_i32_0 = arith.constant 0 : i32
    %c0_i32_1 = arith.constant 0 : i32
    return %c0_i32, %c0_i32_0 : i32, i32
  }
  func.func @transform_4(%arg0: i32) -> (i32, i32) {
    %c0_i32 = arith.constant 0 : i32
    %c0_i32_0 = arith.constant 0 : i32
    %c0_i32_1 = arith.constant 0 : i32
    return %c0_i32, %c0_i32_0 : i32, i32
  }
  func.func @transform_5(%arg0: i32) -> (i32, i32) {
    %c0_i32 = arith.constant 0 : i32
    %c0_i32_0 = arith.constant 0 : i32
    %c0_i32_1 = arith.constant 0 : i32
    return %c0_i32, %c0_i32_0 : i32, i32
  }
  func.func @transform_6(%arg0: i32) -> (i32, i32) {
    %c0_i32 = arith.constant 0 : i32
    %c0_i32_0 = arith.constant 0 : i32
    %c0_i32_1 = arith.constant 0 : i32
    return %c0_i32, %c0_i32_0 : i32, i32
  }
  func.func @transform_7(%arg0: i32) -> (i32, i32) {
    %c0_i32 = arith.constant 0 : i32
    %c0_i32_0 = arith.constant 0 : i32
    %c0_i32_1 = arith.constant 0 : i32
    return %c0_i32, %c0_i32_0 : i32, i32
  }
  func.func @transform_8(%arg0: i32) -> (i32, i32) {
    %c0_i32 = arith.constant 0 : i32
    %c0_i32_0 = arith.constant 0 : i32
    %c0_i32_1 = arith.constant 0 : i32
    return %c0_i32, %c0_i32_0 : i32, i32
  }
  func.func @transform_9(%arg0: i32) -> (i32, i32, i32) {
    %c0_i32 = arith.constant 0 : i32
    %c0_i32_0 = arith.constant 0 : i32
    %c0_i32_1 = arith.constant 0 : i32
    %c0_i32_2 = arith.constant 0 : i32
    return %c0_i32, %c0_i32_0, %c0_i32_1 : i32, i32, i32
  }
  func.func @transform_10(%arg0: i32) -> (i32, i32) {
    %c0_i32 = arith.constant 0 : i32
    %c0_i32_0 = arith.constant 0 : i32
    %c0_i32_1 = arith.constant 0 : i32
    return %c0_i32, %c0_i32_0 : i32, i32
  }
  func.func @transform_11(%arg0: i32) -> (i32, i32) {
    %c0_i32 = arith.constant 0 : i32
    %c0_i32_0 = arith.constant 0 : i32
    return %arg0, %c0_i32 : i32, i32
  }
}

</mosaic_0001>

<llo_original>
// kernel: tpu_custom_call.1
$region0: #{tpu_custom_call.1}
  #allocation0 [shape = 'u32[]', space=smem, size = 0x4, offset = 0x4, fixed_abs, tag = 'smem constant byte address 0x4 - core index']
  #allocation1 [shape = 'u32[72,128]{1,0:T(1,128)}', space=vmem, size = 0x9000, scoped, tag = 'internal scratch']
  %s0 = inlined_call_operand.hbm [shape: bf16[5,16,16], index: 0, kind: input, shape index: {}]
  %s1 = inlined_call_operand.hbm [shape: bf16[16,64], index: 1, kind: input, shape index: {}]
  %s2 = inlined_call_operand.hbm [shape: bf16[16,64], index: 2, kind: input, shape index: {}]
  %s3 = inlined_call_operand.hbm [shape: bf16[16,64], index: 3, kind: input, shape index: {}]
  %s4 = inlined_call_operand.hbm [shape: bf16[64,64], index: 4, kind: input, shape index: {}]
  %s5 = inlined_call_operand.hbm [shape: bf16[64,64], index: 5, kind: input, shape index: {}]
  %s6 = inlined_call_operand.hbm [shape: bf16[64,64], index: 6, kind: input, shape index: {}]
  %s7 = inlined_call_operand.vmem [shape: f32[3,64], index: 7, kind: input, shape index: {}]
  %s8 = inlined_call_operand.vmem [shape: f32[1,64], index: 8, kind: input, shape index: {}]
  %s9 = inlined_call_operand.hbm [shape: bf16[5,64,128], index: 9, kind: input, shape index: {}]
  %s10 = inlined_call_operand.vmem [shape: f32[1,128], index: 10, kind: input, shape index: {}]
  %s11 = inlined_call_operand.hbm [shape: f32[16,128], index: 11, kind: output, shape index: {}]
  %s12 = sld [smem:[#allocation0]]
  $region86: #{tpu_custom_call.1} parent=0
    _
  %s14 = ssub.s32 1, %s12
  %s15 = scalar_select 0, %s14, %s12
  $region1: #{tpu_custom_call.1} parent=0
    #allocation2 [shape = 'u8[20480]{0}', space=vmem, size = 0x5000, scoped, tag = 'input window, operand 0, single buffered']
    #allocation3 [shape = 's32[1]{0}', space=sflag, size = 0x4, scoped, tag = 'scoped memory for tpu_custom_call.1']
    #allocation4 [shape = 's32[1]{0}', space=sflag, size = 0x4, scoped, tag = 'scoped memory for tpu_custom_call.1']
    #allocation5 [shape = 'u8[4096]{0}', space=vmem, size = 0x1000, scoped, tag = 'input window, operand 1, single buffered']
    #allocation6 [shape = 's32[1]{0}', space=sflag, size = 0x4, scoped, tag = 'scoped memory for tpu_custom_call.1']
    #allocation7 [shape = 'u8[4096]{0}', space=vmem, size = 0x1000, scoped, tag = 'input window, operand 2, single buffered']
    #allocation8 [shape = 'u8[4096]{0}', space=vmem, size = 0x1000, scoped, tag = 'input window, operand 3, single buffered']
    #allocation9 [shape = 's32[1]{0}', space=sflag, size = 0x4, scoped, tag = 'scoped memory for tpu_custom_call.1']
    #allocation10 [shape = 'u8[16384]{0}', space=vmem, size = 0x4000, scoped, tag = 'input window, operand 4, single buffered']
    #allocation11 [shape = 'u8[16384]{0}', space=vmem, size = 0x4000, scoped, tag = 'input window, operand 5, single buffered']
    #allocation12 [shape = 's32[1]{0}', space=sflag, size = 0x4, scoped, tag = 'scoped memory for tpu_custom_call.1']
    #allocation13 [shape = 'u8[16384]{0}', space=vmem, size = 0x4000, scoped, tag = 'input window, operand 6, single buffered']
    #allocation14 [shape = 'u8[81920]{0}', space=vmem, size = 0x14000, scoped, tag = 'input window, operand 9, single buffered']
    #allocation15 [shape = 's32[1]{0}', space=sflag, size = 0x4, scoped, tag = 'scoped memory for tpu_custom_call.1']
    #allocation16 [shape = 'u8[8192]{0}', space=vmem, size = 0x2000, scoped, tag = 'output window, operand 0, single buffered']
    %16 = vsyncpa [#allocation3], 0
    %17 = vsyncpa [#allocation6], 0
    %18 = vsyncpa [#allocation9], 0
    %19 = vsyncpa [#allocation12], 0
    %20 = vsyncpa [#allocation15], 0
    %21 = vsyncpa [#allocation4], 0
    // Predicated region
    $region2: #{tpu_custom_call.1} parent=1 // pred_check
      _
    $region3: #{tpu_custom_call.1} parent=1 // pred_check_branch
      %23 = sbr.rel (0) target = $region5
    $region4: #{tpu_custom_call.1} parent=1 // pred_region
      %25 = vsyncadd [#allocation3], 0
      %s26 = sshll.u32 %s0, 4
      %s27 = int_to_ptr.hbm [resolvable:$true] %s26
      %s28 = sshll.u32 [#allocation2], 4
      %s29 = int_to_ptr.vmem [resolvable:$true] %s28
      %34 = dma.hbm_to_vmem [thread:$0]  %s27, 640, %s29, [#allocation3], 64, 64, 4
    $region5: #{tpu_custom_call.1} parent=1 // pred_fallthru
      _
    // Predicated region
    $region6: #{tpu_custom_call.1} parent=1 // pred_check
      _
    $region7: #{tpu_custom_call.1} parent=1 // pred_check_branch
      %36 = sbr.rel (0) target = $region9
    $region8: #{tpu_custom_call.1} parent=1 // pred_region
      %38 = vsyncadd [#allocation6], 0
      %s39 = sshll.u32 %s1, 4
      %s40 = int_to_ptr.hbm [resolvable:$true] %s39
      %s41 = sshll.u32 [#allocation5], 4
      %s42 = int_to_ptr.vmem [resolvable:$true] %s41
      %47 = dma.hbm_to_vmem [thread:$0]  %s40, 128, %s42, [#allocation6], 64, 64, 4
    $region9: #{tpu_custom_call.1} parent=1 // pred_fallthru
      _
    // Predicated region
    $region10: #{tpu_custom_call.1} parent=1 // pred_check
      _
    $region11: #{tpu_custom_call.1} parent=1 // pred_check_branch
      %49 = sbr.rel (0) target = $region13
    $region12: #{tpu_custom_call.1} parent=1 // pred_region
      %51 = vsyncadd [#allocation6], 0
      %s52 = sshll.u32 %s2, 4
      %s53 = int_to_ptr.hbm [resolvable:$true] %s52
      %s54 = sshll.u32 [#allocation7], 4
      %s55 = int_to_ptr.vmem [resolvable:$true] %s54
      %60 = dma.hbm_to_vmem [thread:$0]  %s53, 128, %s55, [#allocation6], 64, 64, 4
    $region13: #{tpu_custom_call.1} parent=1 // pred_fallthru
      _
    // Predicated region
    $region14: #{tpu_custom_call.1} parent=1 // pred_check
      _
    $region15: #{tpu_custom_call.1} parent=1 // pred_check_branch
      %62 = sbr.rel (0) target = $region17
    $region16: #{tpu_custom_call.1} parent=1 // pred_region
      %64 = vsyncadd [#allocation9], 0
      %s65 = sshll.u32 %s3, 4
      %s66 = int_to_ptr.hbm [resolvable:$true] %s65
      %s67 = sshll.u32 [#allocation8], 4
      %s68 = int_to_ptr.vmem [resolvable:$true] %s67
      %73 = dma.hbm_to_vmem [thread:$0]  %s66, 128, %s68, [#allocation9], 64, 64, 4
    $region17: #{tpu_custom_call.1} parent=1 // pred_fallthru
      _
    // Predicated region
    $region18: #{tpu_custom_call.1} parent=1 // pred_check
      _
    $region19: #{tpu_custom_call.1} parent=1 // pred_check_branch
      %75 = sbr.rel (0) target = $region21
    $region20: #{tpu_custom_call.1} parent=1 // pred_region
      %77 = vsyncadd [#allocation9], 0
      %s78 = sshll.u32 %s4, 4
      %s79 = int_to_ptr.hbm [resolvable:$true] %s78
      %s80 = sshll.u32 [#allocation10], 4
      %s81 = int_to_ptr.vmem [resolvable:$true] %s80
      %86 = dma.hbm_to_vmem [thread:$0]  %s79, 512, %s81, [#allocation9], 64, 64, 4
    $region21: #{tpu_custom_call.1} parent=1 // pred_fallthru
      _
    // Predicated region
    $region22: #{tpu_custom_call.1} parent=1 // pred_check
      _
    $region23: #{tpu_custom_call.1} parent=1 // pred_check_branch
      %88 = sbr.rel (0) target = $region25
    $region24: #{tpu_custom_call.1} parent=1 // pred_region
      %90 = vsyncadd [#allocation12], 0
      %s91 = sshll.u32 %s5, 4
      %s92 = int_to_ptr.hbm [resolvable:$true] %s91
      %s93 = sshll.u32 [#allocation11], 4
      %s94 = int_to_ptr.vmem [resolvable:$true] %s93
      %99 = dma.hbm_to_vmem [thread:$0]  %s92, 512, %s94, [#allocation12], 64, 64, 4
    $region25: #{tpu_custom_call.1} parent=1 // pred_fallthru
      _
    // Predicated region
    $region26: #{tpu_custom_call.1} parent=1 // pred_check
      _
    $region27: #{tpu_custom_call.1} parent=1 // pred_check_branch
      %101 = sbr.rel (0) target = $region29
    $region28: #{tpu_custom_call.1} parent=1 // pred_region
      %103 = vsyncadd [#allocation12], 0
      %s104 = sshll.u32 %s6, 4
      %s105 = int_to_ptr.hbm [resolvable:$true] %s104
      %s106 = sshll.u32 [#allocation13], 4
      %s107 = int_to_ptr.vmem [resolvable:$true] %s106
      %112 = dma.hbm_to_vmem [thread:$0]  %s105, 512, %s107, [#allocation12], 64, 64, 4
    $region29: #{tpu_custom_call.1} parent=1 // pred_fallthru
      _
    // Predicated region
    $region30: #{tpu_custom_call.1} parent=1 // pred_check
      _
    $region31: #{tpu_custom_call.1} parent=1 // pred_check_branch
      %114 = sbr.rel (0) target = $region33
    $region32: #{tpu_custom_call.1} parent=1 // pred_region
      _
    $region33: #{tpu_custom_call.1} parent=1 // pred_fallthru
      _
    // Predicated region
    $region34: #{tpu_custom_call.1} parent=1 // pred_check
      _
    $region35: #{tpu_custom_call.1} parent=1 // pred_check_branch
      %116 = sbr.rel (0) target = $region37
    $region36: #{tpu_custom_call.1} parent=1 // pred_region
      _
    $region37: #{tpu_custom_call.1} parent=1 // pred_fallthru
      _
    // Predicated region
    $region38: #{tpu_custom_call.1} parent=1 // pred_check
      _
    $region39: #{tpu_custom_call.1} parent=1 // pred_check_branch
      %118 = sbr.rel (0) target = $region41
    $region40: #{tpu_custom_call.1} parent=1 // pred_region
      %120 = vsyncadd [#allocation15], 0
      %s121 = sshll.u32 %s9, 4
      %s122 = int_to_ptr.hbm [resolvable:$true] %s121
      %s123 = sshll.u32 [#allocation14], 4
      %s124 = int_to_ptr.vmem [resolvable:$true] %s123
      %129 = dma.hbm_to_vmem [thread:$0]  %s122, 2560, %s124, [#allocation15], 64, 64, 4
    $region41: #{tpu_custom_call.1} parent=1 // pred_fallthru
      _
    // Predicated region
    $region42: #{tpu_custom_call.1} parent=1 // pred_check
      _
    $region43: #{tpu_custom_call.1} parent=1 // pred_check_branch
      %131 = sbr.rel (0) target = $region45
    $region44: #{tpu_custom_call.1} parent=1 // pred_region
      _
    $region45: #{tpu_custom_call.1} parent=1 // pred_fallthru
      _
    // Predicated region
    $region46: #{tpu_custom_call.1} parent=1 // pred_check
      _
    $region47: #{tpu_custom_call.1} parent=1 // pred_check_branch
      %133 = sbr.rel (0) target = $region49
    $region48: #{tpu_custom_call.1} parent=1 // pred_region
      %135 = dma.done [#allocation3], 640
    $region49: #{tpu_custom_call.1} parent=1 // pred_fallthru
      _
    // Predicated region
    $region50: #{tpu_custom_call.1} parent=1 // pred_check
      _
    $region51: #{tpu_custom_call.1} parent=1 // pred_check_branch
      %137 = sbr.rel (0) target = $region53
    $region52: #{tpu_custom_call.1} parent=1 // pred_region
      %139 = dma.done [#allocation6], 128
    $region53: #{tpu_custom_call.1} parent=1 // pred_fallthru
      _
    // Predicated region
    $region54: #{tpu_custom_call.1} parent=1 // pred_check
      _
    $region55: #{tpu_custom_call.1} parent=1 // pred_check_branch
      %141 = sbr.rel (0) target = $region57
    $region56: #{tpu_custom_call.1} parent=1 // pred_region
      %143 = dma.done [#allocation6], 128
    $region57: #{tpu_custom_call.1} parent=1 // pred_fallthru
      _
    // Predicated region
    $region58: #{tpu_custom_call.1} parent=1 // pred_check
      _
    $region59: #{tpu_custom_call.1} parent=1 // pred_check_branch
      %145 = sbr.rel (0) target = $region61
    $region60: #{tpu_custom_call.1} parent=1 // pred_region
      %147 = dma.done [#allocation9], 128
    $region61: #{tpu_custom_call.1} parent=1 // pred_fallthru
      _
    // Predicated region
    $region62: #{tpu_custom_call.1} parent=1 // pred_check
      _
    $region63: #{tpu_custom_call.1} parent=1 // pred_check_branch
      %149 = sbr.rel (0) target = $region65
    $region64: #{tpu_custom_call.1} parent=1 // pred_region
      %151 = dma.done [#allocation9], 512
    $region65: #{tpu_custom_call.1} parent=1 // pred_fallthru
      _
    // Predicated region
    $region66: #{tpu_custom_call.1} parent=1 // pred_check
      _
    $region67: #{tpu_custom_call.1} parent=1 // pred_check_branch
      %153 = sbr.rel (0) target = $region69
    $region68: #{tpu_custom_call.1} parent=1 // pred_region
      %155 = dma.done [#allocation12], 512
    $region69: #{tpu_custom_call.1} parent=1 // pred_fallthru
      _
    // Predicated region
    $region70: #{tpu_custom_call.1} parent=1 // pred_check
      _
    $region71: #{tpu_custom_call.1} parent=1 // pred_check_branch
      %157 = sbr.rel (0) target = $region73
    $region72: #{tpu_custom_call.1} parent=1 // pred_region
      %159 = dma.done [#allocation12], 512
    $region73: #{tpu_custom_call.1} parent=1 // pred_fallthru
      _
    // Predicated region
    $region74: #{tpu_custom_call.1} parent=1 // pred_check
      _
    $region75: #{tpu_custom_call.1} parent=1 // pred_check_branch
      %161 = sbr.rel (0) target = $region77
    $region76: #{tpu_custom_call.1} parent=1 // pred_region
      %163 = dma.done [#allocation15], 2560
    $region77: #{tpu_custom_call.1} parent=1 // pred_fallthru
      _
    %v165 = vld [vmem:[#allocation2] sm:$0xf]
    %v166 = vld [vmem:[#allocation2 + $0x4] sm:$0xf]
    %v167 = vld [vmem:[#allocation2 + $0x8] sm:$0xf]
    %v168 = vld [vmem:[#allocation2 + $0xc] sm:$0xf]
    %v169 = vld [vmem:[#allocation2 + $0x10] sm:$0xf]
    %v170 = vld [vmem:[#allocation2 + $0x14] sm:$0xf]
    %v171 = vld [vmem:[#allocation2 + $0x18] sm:$0xf]
    %v172 = vld [vmem:[#allocation2 + $0x1c] sm:$0xf]
    %v173 = vld [vmem:[#allocation2 + $0x20] sm:$0xf]
    %v174 = vld [vmem:[#allocation2 + $0x24] sm:$0xf]
    %v175 = vld [vmem:[%s7] sm:$0x1]
    %v176 = vld [vmem:[%s7 + $0x1] sm:$0x1]
    %v177 = vld [vmem:[%s7 + $0x2] sm:$0x1]
    %v178 = vld [vmem:[%s8] sm:$0x1]
    %v179 = vld [vmem:[#allocation5] sm:$0xf]
    %v180 = vld [vmem:[#allocation5 + $0x4] sm:$0xf]
    %v181 = vperm.slane %v175, 0
    %v192 = vunpack.c.l.b16 %v165
    %v193 = vunpack.c.l.b16 %v166
    %v194 = vunpack.c.l.b16 %v167
    %v195 = vunpack.c.l.b16 %v168
    %v196 = vunpack.c.l.b16 %v169
    %v197 = vunpack.c.l.b16 %v170
    %v198 = vunpack.c.l.b16 %v171
    %v199 = vunpack.c.l.b16 %v172
    %v200 = vunpack.c.l.b16 %v173
    %v201 = vunpack.c.l.b16 %v174
    %v202 = vpack.c.b16 %v193, %v192
    %v203 = vpack.c.b16 %v195, %v194
    %v204 = vpack.c.b16 %v197, %v196
    %v205 = vpack.c.b16 %v199, %v198
    %v206 = vpack.c.b16 %v201, %v200
    %v209 = vunpack.c.l.b16 %v179
    %v210 = vunpack.c.l.b16 %v180
    %v211 = vpack.c.b16 %v210, %v209
    %vm213 = vcmask 130048
    %v215 = vsel %vm213, %v202, 0
    %v218 = vsel %vm213, %v203, 0
    %v221 = vsel %vm213, %v204, 0
    %v224 = vsel %vm213, %v205, 0
    %v227 = vsel %vm213, %v206, 0
    %229 = vmatpush.bf16.msra.mxu0 0
    %230 = vmatpush.bf16.msra.mxu0 0
    %231 = vmatpush.bf16.msra.mxu0 0
    %232 = vmatpush.bf16.msra.mxu0 0
    %233 = vmatpush.bf16.msra.mxu0 0
    %234 = vmatpush.bf16.msra.mxu0 0
    %235 = vmatpush.bf16.msra.mxu0 0
    %236 = vmatpush.bf16.msra.mxu0 %v211
    %237 = vmatmul.bf16.gmra.mxu0 %v215
    %v238 = vpop.f32.mrf.mxu0
    %v239 = vadd.f32 %v181, %v238
    %v240 = vpop.f32.mrf.mxu0
    %v241 = vadd.f32 %v181, %v240
    %242 = vmatmul.bf16.gmra.mxu0 %v218
    %v243 = vpop.f32.mrf.mxu0
    %v244 = vadd.f32 %v181, %v243
    %v245 = vpop.f32.mrf.mxu0
    %v246 = vadd.f32 %v181, %v245
    %247 = vmatmul.bf16.gmra.mxu0 %v221
    %v248 = vpop.f32.mrf.mxu0
    %v249 = vadd.f32 %v181, %v248
    %v250 = vpop.f32.mrf.mxu0
    %v251 = vadd.f32 %v181, %v250
    %252 = vmatmul.bf16.gmra.mxu0 %v224
    %v253 = vpop.f32.mrf.mxu0
    %v254 = vadd.f32 %v181, %v253
    %v255 = vpop.f32.mrf.mxu0
    %v256 = vadd.f32 %v181, %v255
    %257 = vmatmul.bf16.gmra.mxu0 %v227
    %v258 = vpop.f32.mrf.mxu0
    %v259 = vadd.f32 %v181, %v258
    %v260 = vpop.f32.mrf.mxu0
    %v261 = vadd.f32 %v181, %v260
    %262 = vdwg.mxu0
    %v263 = vld [vmem:[#allocation7] sm:$0xf]
    %v264 = vld [vmem:[#allocation7 + $0x4] sm:$0xf]
    %v265 = vperm.slane %v176, 0
    %v268 = vunpack.c.l.b16 %v263
    %v269 = vunpack.c.l.b16 %v264
    %v270 = vpack.c.b16 %v269, %v268
    %272 = vmatpush.bf16.msra.mxu0 0
    %273 = vmatpush.bf16.msra.mxu0 0
    %274 = vmatpush.bf16.msra.mxu0 0
    %275 = vmatpush.bf16.msra.mxu0 0
    %276 = vmatpush.bf16.msra.mxu0 0
    %277 = vmatpush.bf16.msra.mxu0 0
    %278 = vmatpush.bf16.msra.mxu0 0
    %279 = vmatpush.bf16.msra.mxu0 %v270
    %280 = vmatmul.bf16.gmra.mxu0 %v215
    %v281 = vpop.f32.mrf.mxu0
    %v282 = vadd.f32 %v265, %v281
    %v283 = vpop.f32.mrf.mxu0
    %v284 = vadd.f32 %v265, %v283
    %285 = vmatmul.bf16.gmra.mxu0 %v218
    %v286 = vpop.f32.mrf.mxu0
    %v287 = vadd.f32 %v265, %v286
    %v288 = vpop.f32.mrf.mxu0
    %v289 = vadd.f32 %v265, %v288
    %290 = vmatmul.bf16.gmra.mxu0 %v221
    %v291 = vpop.f32.mrf.mxu0
    %v292 = vadd.f32 %v265, %v291
    %v293 = vpop.f32.mrf.mxu0
    %v294 = vadd.f32 %v265, %v293
    %295 = vmatmul.bf16.gmra.mxu0 %v224
    %v296 = vpop.f32.mrf.mxu0
    %v297 = vadd.f32 %v265, %v296
    %v298 = vpop.f32.mrf.mxu0
    %v299 = vadd.f32 %v265, %v298
    %300 = vmatmul.bf16.gmra.mxu0 %v227
    %v301 = vpop.f32.mrf.mxu0
    %v302 = vadd.f32 %v265, %v301
    %v303 = vpop.f32.mrf.mxu0
    %v304 = vadd.f32 %v265, %v303
    %305 = vdwg.mxu0
    %v306 = vld [vmem:[#allocation8] sm:$0xf]
    %v307 = vld [vmem:[#allocation8 + $0x4] sm:$0xf]
    %v308 = vperm.slane %v177, 0
    %v311 = vunpack.c.l.b16 %v306
    %v312 = vunpack.c.l.b16 %v307
    %v313 = vpack.c.b16 %v312, %v311
    %315 = vmatpush.bf16.msra.mxu0 0
    %316 = vmatpush.bf16.msra.mxu0 0
    %317 = vmatpush.bf16.msra.mxu0 0
    %318 = vmatpush.bf16.msra.mxu0 0
    %319 = vmatpush.bf16.msra.mxu0 0
    %320 = vmatpush.bf16.msra.mxu0 0
    %321 = vmatpush.bf16.msra.mxu0 0
    %322 = vmatpush.bf16.msra.mxu0 %v313
    %323 = vmatmul.bf16.gmra.mxu0 %v215
    %v324 = vpop.f32.mrf.mxu0
    %v325 = vadd.f32 %v308, %v324
    %v326 = vpop.f32.mrf.mxu0
    %v327 = vadd.f32 %v308, %v326
    %328 = vmatmul.bf16.gmra.mxu0 %v218
    %v329 = vpop.f32.mrf.mxu0
    %v330 = vadd.f32 %v308, %v329
    %v331 = vpop.f32.mrf.mxu0
    %v332 = vadd.f32 %v308, %v331
    %333 = vmatmul.bf16.gmra.mxu0 %v221
    %v334 = vpop.f32.mrf.mxu0
    %v335 = vadd.f32 %v308, %v334
    %v336 = vpop.f32.mrf.mxu0
    %v337 = vadd.f32 %v308, %v336
    %338 = vmatmul.bf16.gmra.mxu0 %v224
    %v339 = vpop.f32.mrf.mxu0
    %v340 = vadd.f32 %v308, %v339
    %v341 = vpop.f32.mrf.mxu0
    %v342 = vadd.f32 %v308, %v341
    %343 = vmatmul.bf16.gmra.mxu0 %v227
    %v344 = vpop.f32.mrf.mxu0
    %v345 = vadd.f32 %v308, %v344
    %v346 = vpop.f32.mrf.mxu0
    %v347 = vadd.f32 %v308, %v346
    %348 = vdwg.mxu0
    %v349 = vld [vmem:[#allocation10] sm:$0xf]
    %v350 = vld [vmem:[#allocation10 + $0x4] sm:$0xf]
    %v351 = vld [vmem:[#allocation10 + $0x8] sm:$0xf]
    %v352 = vld [vmem:[#allocation10 + $0xc] sm:$0xf]
    %v353 = vld [vmem:[#allocation10 + $0x10] sm:$0xf]
    %v354 = vld [vmem:[#allocation10 + $0x14] sm:$0xf]
    %v355 = vld [vmem:[#allocation10 + $0x18] sm:$0xf]
    %v356 = vld [vmem:[#allocation10 + $0x1c] sm:$0xf]
    %v357 = vld [vmem:[#allocation11] sm:$0xf]
    %v358 = vld [vmem:[#allocation11 + $0x4] sm:$0xf]
    %v359 = vld [vmem:[#allocation11 + $0x8] sm:$0xf]
    %v360 = vld [vmem:[#allocation11 + $0xc] sm:$0xf]
    %v361 = vld [vmem:[#allocation11 + $0x10] sm:$0xf]
    %v362 = vld [vmem:[#allocation11 + $0x14] sm:$0xf]
    %v363 = vld [vmem:[#allocation11 + $0x18] sm:$0xf]
    %v364 = vld [vmem:[#allocation11 + $0x1c] sm:$0xf]
    %v365 = vld [vmem:[#allocation13] sm:$0xf]
    %v366 = vld [vmem:[#allocation13 + $0x4] sm:$0xf]
    %v367 = vld [vmem:[#allocation13 + $0x8] sm:$0xf]
    %v368 = vld [vmem:[#allocation13 + $0xc] sm:$0xf]
    %v369 = vld [vmem:[#allocation13 + $0x10] sm:$0xf]
    %v370 = vld [vmem:[#allocation13 + $0x14] sm:$0xf]
    %v371 = vld [vmem:[#allocation13 + $0x18] sm:$0xf]
    %v372 = vld [vmem:[#allocation13 + $0x1c] sm:$0xf]
    %v373 = vxor.u32 %v239, 2147483648
    %v374 = vxor.u32 %v241, 2147483648
    %v375 = vmul.f32 %v373, 1.442695
    %v376 = vpow.pop %v375
    %v377 = vmul.f32 %v374, 1.442695
    %v378 = vpow.pop %v377
    %v379 = vadd.f32 %v376, 1.0
    %v380 = vadd.f32 %v378, 1.0
    %v381 = vrcp.pop %v379
    %v382 = vmul.f32 %v379, %v381
    %v383 = vsub.f32 1.0, %v382
    %v384 = vmul.f32 %v381, %v383
    %v385 = vadd.f32 %v381, %v384
    %vm386 = vweird.f32 %v379
    %vm387 = vweird.f32 %v381
    %vm388 = vmor %vm386, %vm387
    %v389 = vsel %vm388, %v381, %v385
    %v390 = vand.u32 2147483647, %v379
    %vm391 = vcmp.eq.f32.partialorder %v390, 8.507059e+37
    %v392 = vand.u32 %v379, 2147483648
    %v393 = vor.u32 1.1754944e-38, %v392
    %v394 = vsel %vm391, %v393, %v389
    %v395 = vmul.f32 1.0, %v394
    %v396 = vrcp.pop %v380
    %v397 = vmul.f32 %v380, %v396
    %v398 = vsub.f32 1.0, %v397
    %v399 = vmul.f32 %v396, %v398
    %v400 = vadd.f32 %v396, %v399
    %vm401 = vweird.f32 %v380
    %vm402 = vweird.f32 %v396
    %vm403 = vmor %vm401, %vm402
    %v404 = vsel %vm403, %v396, %v400
    %v405 = vand.u32 2147483647, %v380
    %vm406 = vcmp.eq.f32.partialorder %v405, 8.507059e+37
    %v407 = vand.u32 %v380, 2147483648
    %v408 = vor.u32 1.1754944e-38, %v407
    %v409 = vsel %vm406, %v408, %v404
    %v410 = vmul.f32 1.0, %v409
    %v411 = vxor.u32 %v282, 2147483648
    %v412 = vxor.u32 %v284, 2147483648
    %v413 = vmul.f32 %v411, 1.442695
    %v414 = vpow.pop %v413
    %v415 = vmul.f32 %v412, 1.442695
    %v416 = vpow.pop %v415
    %v417 = vadd.f32 %v414, 1.0
    %v418 = vadd.f32 %v416, 1.0
    %v419 = vrcp.pop %v417
    %v420 = vmul.f32 %v417, %v419
    %v421 = vsub.f32 1.0, %v420
    %v422 = vmul.f32 %v419, %v421
    %v423 = vadd.f32 %v419, %v422
    %vm424 = vweird.f32 %v417
    %vm425 = vweird.f32 %v419
    %vm426 = vmor %vm424, %vm425
    %v427 = vsel %vm426, %v419, %v423
    %v428 = vand.u32 2147483647, %v417
    %vm429 = vcmp.eq.f32.partialorder %v428, 8.507059e+37
    %v430 = vand.u32 %v417, 2147483648
    %v431 = vor.u32 1.1754944e-38, %v430
    %v432 = vsel %vm429, %v431, %v427
    %v433 = vmul.f32 1.0, %v432
    %v434 = vrcp.pop %v418
    %v435 = vmul.f32 %v418, %v434
    %v436 = vsub.f32 1.0, %v435
    %v437 = vmul.f32 %v434, %v436
    %v438 = vadd.f32 %v434, %v437
    %vm439 = vweird.f32 %v418
    %vm440 = vweird.f32 %v434
    %vm441 = vmor %vm439, %vm440
    %v442 = vsel %vm441, %v434, %v438
    %v443 = vand.u32 2147483647, %v418
    %vm444 = vcmp.eq.f32.partialorder %v443, 8.507059e+37
    %v445 = vand.u32 %v418, 2147483648
    %v446 = vor.u32 1.1754944e-38, %v445
    %v447 = vsel %vm444, %v446, %v442
    %v448 = vmul.f32 1.0, %v447
    %v450 = vperm.slane %v178, 0
    %v452 = vmul.f32 %v395, %v450
    %v453 = vmul.f32 %v410, %v450
    %v454 = vadd.f32 %v325, %v452
    %v455 = vadd.f32 %v327, %v453
    %v456 = vtanh.pop %v454
    %v457 = vtanh.pop %v455
    %v458 = vsub.f32 1.0, %v433
    %v459 = vsub.f32 1.0, %v448
    %v460 = vmul.f32 %v458, %v456
    %v461 = vmul.f32 %v459, %v457
    %v462 = vxor.u32 %v460, 2147483648
    %v463 = vxor.u32 %v461, 2147483648
    %v464 = vmul.f32 %v462, 1.442695
    %v465 = vpow.pop %v464
    %v466 = vmul.f32 %v463, 1.442695
    %v467 = vpow.pop %v466
    %v468 = vadd.f32 %v465, 1.0
    %v469 = vadd.f32 %v467, 1.0
    %v470 = vrcp.pop %v468
    %v471 = vmul.f32 %v468, %v470
    %v472 = vsub.f32 1.0, %v471
    %v473 = vmul.f32 %v470, %v472
    %v474 = vadd.f32 %v470, %v473
    %vm475 = vweird.f32 %v468
    %vm476 = vweird.f32 %v470
    %vm477 = vmor %vm475, %vm476
    %v478 = vsel %vm477, %v470, %v474
    %v479 = vand.u32 2147483647, %v468
    %vm480 = vcmp.eq.f32.partialorder %v479, 8.507059e+37
    %v481 = vand.u32 %v468, 2147483648
    %v482 = vor.u32 1.1754944e-38, %v481
    %v483 = vsel %vm480, %v482, %v478
    %v484 = vmul.f32 1.0, %v483
    %v485 = vrcp.pop %v469
    %v486 = vmul.f32 %v469, %v485
    %v487 = vsub.f32 1.0, %v486
    %v488 = vmul.f32 %v485, %v487
    %v489 = vadd.f32 %v485, %v488
    %vm490 = vweird.f32 %v469
    %vm491 = vweird.f32 %v485
    %vm492 = vmor %vm490, %vm491
    %v493 = vsel %vm492, %v485, %v489
    %v494 = vand.u32 2147483647, %v469
    %vm495 = vcmp.eq.f32.partialorder %v494, 8.507059e+37
    %v496 = vand.u32 %v469, 2147483648
    %v497 = vor.u32 1.1754944e-38, %v496
    %v498 = vsel %vm495, %v497, %v493
    %v499 = vmul.f32 1.0, %v498
    %v500 = vpack.c.bf16 %v499, %v484
    %v501 = vld [vmem:[#allocation14] sm:$0xf]
    %v502 = vld [vmem:[#allocation14 + $0x4] sm:$0xf]
    %v503 = vld [vmem:[#allocation14 + $0x8] sm:$0xf]
    %v504 = vld [vmem:[#allocation14 + $0xc] sm:$0xf]
    %v505 = vld [vmem:[#allocation14 + $0x10] sm:$0xf]
    %v506 = vld [vmem:[#allocation14 + $0x14] sm:$0xf]
    %v507 = vld [vmem:[#allocation14 + $0x18] sm:$0xf]
    %v508 = vld [vmem:[#allocation14 + $0x1c] sm:$0xf]
    %v509 = vpack.c.bf16 %v461, %v460
    %v518 = vunpack.c.l.b16 %v349
    %v519 = vunpack.c.l.b16 %v350
    %v520 = vunpack.c.l.b16 %v351
    %v521 = vunpack.c.l.b16 %v352
    %v522 = vunpack.c.l.b16 %v353
    %v523 = vunpack.c.l.b16 %v354
    %v524 = vunpack.c.l.b16 %v355
    %v525 = vunpack.c.l.b16 %v356
    %v526 = vpack.c.b16 %v519, %v518
    %v527 = vpack.c.b16 %v521, %v520
    %v528 = vpack.c.b16 %v523, %v522
    %v529 = vpack.c.b16 %v525, %v524
    %vm534 = vcmask 523264
    %v536 = vsel %vm534, %v509, 0
    %538 = vmatpush.bf16.msra.mxu0 0
    %539 = vmatpush.bf16.msra.mxu0 0
    %540 = vmatpush.bf16.msra.mxu0 0
    %541 = vmatpush.bf16.msra.mxu0 0
    %542 = vmatpush.bf16.msra.mxu0 %v529
    %543 = vmatpush.bf16.msra.mxu0 %v528
    %544 = vmatpush.bf16.msra.mxu0 %v527
    %545 = vmatpush.bf16.msra.mxu0 %v526
    %546 = vmatmul.bf16.gmra.mxu0 %v536
    %v547 = vpop.f32.mrf.mxu0
    %v548 = vadd.f32 0.0, %v547
    %v549 = vpop.f32.mrf.mxu0
    %v550 = vadd.f32 0.0, %v549
    %551 = vdwg.mxu0
    %v560 = vunpack.c.l.b16 %v357
    %v561 = vunpack.c.l.b16 %v358
    %v562 = vunpack.c.l.b16 %v359
    %v563 = vunpack.c.l.b16 %v360
    %v564 = vunpack.c.l.b16 %v361
    %v565 = vunpack.c.l.b16 %v362
    %v566 = vunpack.c.l.b16 %v363
    %v567 = vunpack.c.l.b16 %v364
    %v568 = vpack.c.b16 %v561, %v560
    %v569 = vpack.c.b16 %v563, %v562
    %v570 = vpack.c.b16 %v565, %v564
    %v571 = vpack.c.b16 %v567, %v566
    %576 = vmatpush.bf16.msra.mxu0 0
    %577 = vmatpush.bf16.msra.mxu0 0
    %578 = vmatpush.bf16.msra.mxu0 0
    %579 = vmatpush.bf16.msra.mxu0 0
    %580 = vmatpush.bf16.msra.mxu0 %v571
    %581 = vmatpush.bf16.msra.mxu0 %v570
    %582 = vmatpush.bf16.msra.mxu0 %v569
    %583 = vmatpush.bf16.msra.mxu0 %v568
    %584 = vmatmul.bf16.gmra.mxu0 %v536
    %v585 = vpop.f32.mrf.mxu0
    %v586 = vadd.f32 0.0, %v585
    %v587 = vpop.f32.mrf.mxu0
    %v588 = vadd.f32 0.0, %v587
    %589 = vdwg.mxu0
    %v598 = vunpack.c.l.b16 %v365
    %v599 = vunpack.c.l.b16 %v366
    %v600 = vunpack.c.l.b16 %v367
    %v601 = vunpack.c.l.b16 %v368
    %v602 = vunpack.c.l.b16 %v369
    %v603 = vunpack.c.l.b16 %v370
    %v604 = vunpack.c.l.b16 %v371
    %v605 = vunpack.c.l.b16 %v372
    %v606 = vpack.c.b16 %v599, %v598
    %v607 = vpack.c.b16 %v601, %v600
    %v608 = vpack.c.b16 %v603, %v602
    %v609 = vpack.c.b16 %v605, %v604
    %614 = vmatpush.bf16.msra.mxu0 0
    %615 = vmatpush.bf16.msra.mxu0 0
    %616 = vmatpush.bf16.msra.mxu0 0
    %617 = vmatpush.bf16.msra.mxu0 0
    %618 = vmatpush.bf16.msra.mxu0 %v609
    %619 = vmatpush.bf16.msra.mxu0 %v608
    %620 = vmatpush.bf16.msra.mxu0 %v607
    %621 = vmatpush.bf16.msra.mxu0 %v606
    %622 = vmatmul.bf16.gmra.mxu0 %v536
    %v623 = vpop.f32.mrf.mxu0
    %v624 = vadd.f32 %v450, %v623
    %v625 = vpop.f32.mrf.mxu0
    %v626 = vadd.f32 %v450, %v625
    %627 = vdwg.mxu0
    %v628 = vadd.f32 %v244, %v548
    %v629 = vadd.f32 %v246, %v550
    %v630 = vxor.u32 %v628, 2147483648
    %v631 = vxor.u32 %v629, 2147483648
    %v632 = vmul.f32 %v630, 1.442695
    %v633 = vpow.pop %v632
    %v634 = vmul.f32 %v631, 1.442695
    %v635 = vpow.pop %v634
    %v636 = vadd.f32 %v633, 1.0
    %v637 = vadd.f32 %v635, 1.0
    %v638 = vrcp.pop %v636
    %v639 = vmul.f32 %v636, %v638
    %v640 = vsub.f32 1.0, %v639
    %v641 = vmul.f32 %v638, %v640
    %v642 = vadd.f32 %v638, %v641
    %vm643 = vweird.f32 %v636
    %vm644 = vweird.f32 %v638
    %vm645 = vmor %vm643, %vm644
    %v646 = vsel %vm645, %v638, %v642
    %v647 = vand.u32 2147483647, %v636
    %vm648 = vcmp.eq.f32.partialorder %v647, 8.507059e+37
    %v649 = vand.u32 %v636, 2147483648
    %v650 = vor.u32 1.1754944e-38, %v649
    %v651 = vsel %vm648, %v650, %v646
    %v652 = vmul.f32 1.0, %v651
    %v653 = vrcp.pop %v637
    %v654 = vmul.f32 %v637, %v653
    %v655 = vsub.f32 1.0, %v654
    %v656 = vmul.f32 %v653, %v655
    %v657 = vadd.f32 %v653, %v656
    %vm658 = vweird.f32 %v637
    %vm659 = vweird.f32 %v653
    %vm660 = vmor %vm658, %vm659
    %v661 = vsel %vm660, %v653, %v657
    %v662 = vand.u32 2147483647, %v637
    %vm663 = vcmp.eq.f32.partialorder %v662, 8.507059e+37
    %v664 = vand.u32 %v637, 2147483648
    %v665 = vor.u32 1.1754944e-38, %v664
    %v666 = vsel %vm663, %v665, %v661
    %v667 = vmul.f32 1.0, %v666
    %v668 = vadd.f32 %v287, %v586
    %v669 = vadd.f32 %v289, %v588
    %v670 = vxor.u32 %v668, 2147483648
    %v671 = vxor.u32 %v669, 2147483648
    %v672 = vmul.f32 %v670, 1.442695
    %v673 = vpow.pop %v672
    %v674 = vmul.f32 %v671, 1.442695
    %v675 = vpow.pop %v674
    %v676 = vadd.f32 %v673, 1.0
    %v677 = vadd.f32 %v675, 1.0
    %v678 = vrcp.pop %v676
    %v679 = vmul.f32 %v676, %v678
    %v680 = vsub.f32 1.0, %v679
    %v681 = vmul.f32 %v678, %v680
    %v682 = vadd.f32 %v678, %v681
    %vm683 = vweird.f32 %v676
    %vm684 = vweird.f32 %v678
    %vm685 = vmor %vm683, %vm684
    %v686 = vsel %vm685, %v678, %v682
    %v687 = vand.u32 2147483647, %v676
    %vm688 = vcmp.eq.f32.partialorder %v687, 8.507059e+37
    %v689 = vand.u32 %v676, 2147483648
    %v690 = vor.u32 1.1754944e-38, %v689
    %v691 = vsel %vm688, %v690, %v686
    %v692 = vmul.f32 1.0, %v691
    %v693 = vrcp.pop %v677
    %v694 = vmul.f32 %v677, %v693
    %v695 = vsub.f32 1.0, %v694
    %v696 = vmul.f32 %v693, %v695
    %v697 = vadd.f32 %v693, %v696
    %vm698 = vweird.f32 %v677
    %vm699 = vweird.f32 %v693
    %vm700 = vmor %vm698, %vm699
    %v701 = vsel %vm700, %v693, %v697
    %v702 = vand.u32 2147483647, %v677
    %vm703 = vcmp.eq.f32.partialorder %v702, 8.507059e+37
    %v704 = vand.u32 %v677, 2147483648
    %v705 = vor.u32 1.1754944e-38, %v704
    %v706 = vsel %vm703, %v705, %v701
    %v707 = vmul.f32 1.0, %v706
    %v708 = vmul.f32 %v652, %v624
    %v709 = vmul.f32 %v667, %v626
    %v710 = vadd.f32 %v330, %v708
    %v711 = vadd.f32 %v332, %v709
    %v712 = vtanh.pop %v710
    %v713 = vtanh.pop %v711
    %v714 = vsub.f32 1.0, %v692
    %v715 = vsub.f32 1.0, %v707
    %v716 = vmul.f32 %v714, %v712
    %v717 = vmul.f32 %v715, %v713
    %v718 = vmul.f32 %v692, %v460
    %v719 = vmul.f32 %v707, %v461
    %v720 = vadd.f32 %v716, %v718
    %v721 = vadd.f32 %v717, %v719
    %v722 = vxor.u32 %v720, 2147483648
    %v723 = vxor.u32 %v721, 2147483648
    %v724 = vmul.f32 %v722, 1.442695
    %v725 = vpow.pop %v724
    %v726 = vmul.f32 %v723, 1.442695
    %v727 = vpow.pop %v726
    %v728 = vadd.f32 %v725, 1.0
    %v729 = vadd.f32 %v727, 1.0
    %v730 = vrcp.pop %v728
    %v731 = vmul.f32 %v728, %v730
    %v732 = vsub.f32 1.0, %v731
    %v733 = vmul.f32 %v730, %v732
    %v734 = vadd.f32 %v730, %v733
    %vm735 = vweird.f32 %v728
    %vm736 = vweird.f32 %v730
    %vm737 = vmor %vm735, %vm736
    %v738 = vsel %vm737, %v730, %v734
    %v739 = vand.u32 2147483647, %v728
    %vm740 = vcmp.eq.f32.partialorder %v739, 8.507059e+37
    %v741 = vand.u32 %v728, 2147483648
    %v742 = vor.u32 1.1754944e-38, %v741
    %v743 = vsel %vm740, %v742, %v738
    %v744 = vmul.f32 1.0, %v743
    %v745 = vrcp.pop %v729
    %v746 = vmul.f32 %v729, %v745
    %v747 = vsub.f32 1.0, %v746
    %v748 = vmul.f32 %v745, %v747
    %v749 = vadd.f32 %v745, %v748
    %vm750 = vweird.f32 %v729
    %vm751 = vweird.f32 %v745
    %vm752 = vmor %vm750, %vm751
    %v753 = vsel %vm752, %v745, %v749
    %v754 = vand.u32 2147483647, %v729
    %vm755 = vcmp.eq.f32.partialorder %v754, 8.507059e+37
    %v756 = vand.u32 %v729, 2147483648
    %v757 = vor.u32 1.1754944e-38, %v756
    %v758 = vsel %vm755, %v757, %v753
    %v759 = vmul.f32 1.0, %v758
    %v760 = vpack.c.bf16 %v759, %v744
    %s761 = scalar_lea.vmem [#allocation14], 32
    %v762 = vld [vmem:[%s761] sm:$0xf]
    %v763 = vld [vmem:[%s761 + $0x4] sm:$0xf]
    %v764 = vld [vmem:[%s761 + $0x8] sm:$0xf]
    %v765 = vld [vmem:[%s761 + $0xc] sm:$0xf]
    %v766 = vld [vmem:[%s761 + $0x10] sm:$0xf]
    %v767 = vld [vmem:[%s761 + $0x14] sm:$0xf]
    %v768 = vld [vmem:[%s761 + $0x18] sm:$0xf]
    %v769 = vld [vmem:[%s761 + $0x1c] sm:$0xf]
    %v778 = vunpack.c.l.b16 %v762
    %v779 = vunpack.c.l.b16 %v763
    %v780 = vunpack.c.l.b16 %v764
    %v781 = vunpack.c.l.b16 %v765
    %v782 = vunpack.c.l.b16 %v766
    %v783 = vunpack.c.l.b16 %v767
    %v784 = vunpack.c.l.b16 %v768
    %v785 = vunpack.c.l.b16 %v769
    %v786 = vpack.c.b16 %v779, %v778
    %v787 = vpack.c.b16 %v781, %v780
    %v788 = vpack.c.b16 %v783, %v782
    %v789 = vpack.c.b16 %v785, %v784
    %v795 = vsel %vm534, %v760, 0
    %797 = vmatpush.bf16.msra.mxu0 0
    %798 = vmatpush.bf16.msra.mxu0 0
    %799 = vmatpush.bf16.msra.mxu0 0
    %800 = vmatpush.bf16.msra.mxu0 0
    %801 = vmatpush.bf16.msra.mxu0 %v789
    %802 = vmatpush.bf16.msra.mxu0 %v788
    %803 = vmatpush.bf16.msra.mxu0 %v787
    %804 = vmatpush.bf16.msra.mxu0 %v786
    %805 = vmatmul.bf16.gmra.mxu0 %v795
    %v806 = vpop.f32.mrf.mxu0
    %v807 = vadd.f32 0.0, %v806
    %v808 = vpop.f32.mrf.mxu0
    %v809 = vadd.f32 0.0, %v808
    %810 = vdwg.mxu0
    %v819 = vunpack.c.l.b16 %v501
    %v820 = vunpack.c.l.b16 %v502
    %v821 = vunpack.c.l.b16 %v503
    %v822 = vunpack.c.l.b16 %v504
    %v823 = vunpack.c.l.b16 %v505
    %v824 = vunpack.c.l.b16 %v506
    %v825 = vunpack.c.l.b16 %v507
    %v826 = vunpack.c.l.b16 %v508
    %v827 = vpack.c.b16 %v820, %v819
    %v828 = vpack.c.b16 %v822, %v821
    %v829 = vpack.c.b16 %v824, %v823
    %v830 = vpack.c.b16 %v826, %v825
    %v836 = vsel %vm534, %v500, 0
    %838 = vmatpush.bf16.msra.mxu0 0
    %839 = vmatpush.bf16.msra.mxu0 0
    %840 = vmatpush.bf16.msra.mxu0 0
    %841 = vmatpush.bf16.msra.mxu0 0
    %842 = vmatpush.bf16.msra.mxu0 %v830
    %843 = vmatpush.bf16.msra.mxu0 %v829
    %844 = vmatpush.bf16.msra.mxu0 %v828
    %845 = vmatpush.bf16.msra.mxu0 %v827
    %846 = vmatmul.bf16.gmra.mxu0 %v836
    %v847 = vpop.f32.mrf.mxu0
    %v848 = vadd.f32 %v807, %v847
    %v849 = vpop.f32.mrf.mxu0
    %v850 = vadd.f32 %v809, %v849
    %851 = vdwg.mxu0
    %v852 = vpack.c.bf16 %v721, %v720
    %v854 = vsel %vm534, %v852, 0
    %856 = vmatpush.bf16.msra.mxu0 0
    %857 = vmatpush.bf16.msra.mxu0 0
    %858 = vmatpush.bf16.msra.mxu0 0
    %859 = vmatpush.bf16.msra.mxu0 0
    %860 = vmatpush.bf16.msra.mxu0 %v529
    %861 = vmatpush.bf16.msra.mxu0 %v528
    %862 = vmatpush.bf16.msra.mxu0 %v527
    %863 = vmatpush.bf16.msra.mxu0 %v526
    %864 = vmatmul.bf16.gmra.mxu0 %v854
    %v865 = vpop.f32.mrf.mxu0
    %v866 = vadd.f32 0.0, %v865
    %v867 = vpop.f32.mrf.mxu0
    %v868 = vadd.f32 0.0, %v867
    %869 = vdwg.mxu0
    %870 = vmatpush.bf16.msra.mxu0 0
    %871 = vmatpush.bf16.msra.mxu0 0
    %872 = vmatpush.bf16.msra.mxu0 0
    %873 = vmatpush.bf16.msra.mxu0 0
    %874 = vmatpush.bf16.msra.mxu0 %v571
    %875 = vmatpush.bf16.msra.mxu0 %v570
    %876 = vmatpush.bf16.msra.mxu0 %v569
    %877 = vmatpush.bf16.msra.mxu0 %v568
    %878 = vmatmul.bf16.gmra.mxu0 %v854
    %v879 = vpop.f32.mrf.mxu0
    %v880 = vadd.f32 0.0, %v879
    %v881 = vpop.f32.mrf.mxu0
    %v882 = vadd.f32 0.0, %v881
    %883 = vdwg.mxu0
    %884 = vmatpush.bf16.msra.mxu0 0
    %885 = vmatpush.bf16.msra.mxu0 0
    %886 = vmatpush.bf16.msra.mxu0 0
    %887 = vmatpush.bf16.msra.mxu0 0
    %888 = vmatpush.bf16.msra.mxu0 %v609
    %889 = vmatpush.bf16.msra.mxu0 %v608
    %890 = vmatpush.bf16.msra.mxu0 %v607
    %891 = vmatpush.bf16.msra.mxu0 %v606
    %892 = vmatmul.bf16.gmra.mxu0 %v854
    %v893 = vpop.f32.mrf.mxu0
    %v894 = vadd.f32 %v450, %v893
    %v895 = vpop.f32.mrf.mxu0
    %v896 = vadd.f32 %v450, %v895
    %897 = vdwg.mxu0
    %v898 = vadd.f32 %v249, %v866
    %v899 = vadd.f32 %v251, %v868
    %v900 = vxor.u32 %v898, 2147483648
    %v901 = vxor.u32 %v899, 2147483648
    %v902 = vmul.f32 %v900, 1.442695
    %v903 = vpow.pop %v902
    %v904 = vmul.f32 %v901, 1.442695
    %v905 = vpow.pop %v904
    %v906 = vadd.f32 %v903, 1.0
    %v907 = vadd.f32 %v905, 1.0
    %v908 = vrcp.pop %v906
    %v909 = vmul.f32 %v906, %v908
    %v910 = vsub.f32 1.0, %v909
    %v911 = vmul.f32 %v908, %v910
    %v912 = vadd.f32 %v908, %v911
    %vm913 = vweird.f32 %v906
    %vm914 = vweird.f32 %v908
    %vm915 = vmor %vm913, %vm914
    %v916 = vsel %vm915, %v908, %v912
    %v917 = vand.u32 2147483647, %v906
    %vm918 = vcmp.eq.f32.partialorder %v917, 8.507059e+37
    %v919 = vand.u32 %v906, 2147483648
    %v920 = vor.u32 1.1754944e-38, %v919
    %v921 = vsel %vm918, %v920, %v916
    %v922 = vmul.f32 1.0, %v921
    %v923 = vrcp.pop %v907
    %v924 = vmul.f32 %v907, %v923
    %v925 = vsub.f32 1.0, %v924
    %v926 = vmul.f32 %v923, %v925
    %v927 = vadd.f32 %v923, %v926
    %vm928 = vweird.f32 %v907
    %vm929 = vweird.f32 %v923
    %vm930 = vmor %vm928, %vm929
    %v931 = vsel %vm930, %v923, %v927
    %v932 = vand.u32 2147483647, %v907
    %vm933 = vcmp.eq.f32.partialorder %v932, 8.507059e+37
    %v934 = vand.u32 %v907, 2147483648
    %v935 = vor.u32 1.1754944e-38, %v934
    %v936 = vsel %vm933, %v935, %v931
    %v937 = vmul.f32 1.0, %v936
    %v938 = vadd.f32 %v292, %v880
    %v939 = vadd.f32 %v294, %v882
    %v940 = vxor.u32 %v938, 2147483648
    %v941 = vxor.u32 %v939, 2147483648
    %v942 = vmul.f32 %v940, 1.442695
    %v943 = vpow.pop %v942
    %v944 = vmul.f32 %v941, 1.442695
    %v945 = vpow.pop %v944
    %v946 = vadd.f32 %v943, 1.0
    %v947 = vadd.f32 %v945, 1.0
    %v948 = vrcp.pop %v946
    %v949 = vmul.f32 %v946, %v948
    %v950 = vsub.f32 1.0, %v949
    %v951 = vmul.f32 %v948, %v950
    %v952 = vadd.f32 %v948, %v951
    %vm953 = vweird.f32 %v946
    %vm954 = vweird.f32 %v948
    %vm955 = vmor %vm953, %vm954
    %v956 = vsel %vm955, %v948, %v952
    %v957 = vand.u32 2147483647, %v946
    %vm958 = vcmp.eq.f32.partialorder %v957, 8.507059e+37
    %v959 = vand.u32 %v946, 2147483648
    %v960 = vor.u32 1.1754944e-38, %v959
    %v961 = vsel %vm958, %v960, %v956
    %v962 = vmul.f32 1.0, %v961
    %v963 = vrcp.pop %v947
    %v964 = vmul.f32 %v947, %v963
    %v965 = vsub.f32 1.0, %v964
    %v966 = vmul.f32 %v963, %v965
    %v967 = vadd.f32 %v963, %v966
    %vm968 = vweird.f32 %v947
    %vm969 = vweird.f32 %v963
    %vm970 = vmor %vm968, %vm969
    %v971 = vsel %vm970, %v963, %v967
    %v972 = vand.u32 2147483647, %v947
    %vm973 = vcmp.eq.f32.partialorder %v972, 8.507059e+37
    %v974 = vand.u32 %v947, 2147483648
    %v975 = vor.u32 1.1754944e-38, %v974
    %v976 = vsel %vm973, %v975, %v971
    %v977 = vmul.f32 1.0, %v976
    %v978 = vmul.f32 %v922, %v894
    %v979 = vmul.f32 %v937, %v896
    %v980 = vadd.f32 %v335, %v978
    %v981 = vadd.f32 %v337, %v979
    %v982 = vtanh.pop %v980
    %v983 = vtanh.pop %v981
    %v984 = vsub.f32 1.0, %v962
    %v985 = vsub.f32 1.0, %v977
    %v986 = vmul.f32 %v984, %v982
    %v987 = vmul.f32 %v985, %v983
    %v988 = vmul.f32 %v962, %v720
    %v989 = vmul.f32 %v977, %v721
    %v990 = vadd.f32 %v986, %v988
    %v991 = vadd.f32 %v987, %v989
    %v992 = vxor.u32 %v990, 2147483648
    %v993 = vxor.u32 %v991, 2147483648
    %v994 = vmul.f32 %v992, 1.442695
    %v995 = vpow.pop %v994
    %v996 = vmul.f32 %v993, 1.442695
    %v997 = vpow.pop %v996
    %v998 = vadd.f32 %v995, 1.0
    %v999 = vadd.f32 %v997, 1.0
    %v1000 = vrcp.pop %v998
    %v1001 = vmul.f32 %v998, %v1000
    %v1002 = vsub.f32 1.0, %v1001
    %v1003 = vmul.f32 %v1000, %v1002
    %v1004 = vadd.f32 %v1000, %v1003
    %vm1005 = vweird.f32 %v998
    %vm1006 = vweird.f32 %v1000
    %vm1007 = vmor %vm1005, %vm1006
    %v1008 = vsel %vm1007, %v1000, %v1004
    %v1009 = vand.u32 2147483647, %v998
    %vm1010 = vcmp.eq.f32.partialorder %v1009, 8.507059e+37
    %v1011 = vand.u32 %v998, 2147483648
    %v1012 = vor.u32 1.1754944e-38, %v1011
    %v1013 = vsel %vm1010, %v1012, %v1008
    %v1014 = vmul.f32 1.0, %v1013
    %v1015 = vrcp.pop %v999
    %v1016 = vmul.f32 %v999, %v1015
    %v1017 = vsub.f32 1.0, %v1016
    %v1018 = vmul.f32 %v1015, %v1017
    %v1019 = vadd.f32 %v1015, %v1018
    %vm1020 = vweird.f32 %v999
    %vm1021 = vweird.f32 %v1015
    %vm1022 = vmor %vm1020, %vm1021
    %v1023 = vsel %vm1022, %v1015, %v1019
    %v1024 = vand.u32 2147483647, %v999
    %vm1025 = vcmp.eq.f32.partialorder %v1024, 8.507059e+37
    %v1026 = vand.u32 %v999, 2147483648
    %v1027 = vor.u32 1.1754944e-38, %v1026
    %v1028 = vsel %vm1025, %v1027, %v1023
    %v1029 = vmul.f32 1.0, %v1028
    %v1030 = vpack.c.bf16 %v1029, %v1014
    %s1031 = scalar_lea.vmem [#allocation14], 64
    %v1032 = vld [vmem:[%s1031] sm:$0xf]
    %v1033 = vld [vmem:[%s1031 + $0x4] sm:$0xf]
    %v1034 = vld [vmem:[%s1031 + $0x8] sm:$0xf]
    %v1035 = vld [vmem:[%s1031 + $0xc] sm:$0xf]
    %v1036 = vld [vmem:[%s1031 + $0x10] sm:$0xf]
    %v1037 = vld [vmem:[%s1031 + $0x14] sm:$0xf]
    %v1038 = vld [vmem:[%s1031 + $0x18] sm:$0xf]
    %v1039 = vld [vmem:[%s1031 + $0x1c] sm:$0xf]
    %v1048 = vunpack.c.l.b16 %v1032
    %v1049 = vunpack.c.l.b16 %v1033
    %v1050 = vunpack.c.l.b16 %v1034
    %v1051 = vunpack.c.l.b16 %v1035
    %v1052 = vunpack.c.l.b16 %v1036
    %v1053 = vunpack.c.l.b16 %v1037
    %v1054 = vunpack.c.l.b16 %v1038
    %v1055 = vunpack.c.l.b16 %v1039
    %v1056 = vpack.c.b16 %v1049, %v1048
    %v1057 = vpack.c.b16 %v1051, %v1050
    %v1058 = vpack.c.b16 %v1053, %v1052
    %v1059 = vpack.c.b16 %v1055, %v1054
    %v1065 = vsel %vm534, %v1030, 0
    %1067 = vmatpush.bf16.msra.mxu0 0
    %1068 = vmatpush.bf16.msra.mxu0 0
    %1069 = vmatpush.bf16.msra.mxu0 0
    %1070 = vmatpush.bf16.msra.mxu0 0
    %1071 = vmatpush.bf16.msra.mxu0 %v1059
    %1072 = vmatpush.bf16.msra.mxu0 %v1058
    %1073 = vmatpush.bf16.msra.mxu0 %v1057
    %1074 = vmatpush.bf16.msra.mxu0 %v1056
    %1075 = vmatmul.bf16.gmra.mxu0 %v1065
    %v1076 = vpop.f32.mrf.mxu0
    %v1077 = vadd.f32 0.0, %v1076
    %v1078 = vpop.f32.mrf.mxu0
    %v1079 = vadd.f32 0.0, %v1078
    %1080 = vdwg.mxu0
    %v1081 = vadd.f32 %v848, %v1077
    %v1082 = vadd.f32 %v850, %v1079
    %v1083 = vpack.c.bf16 %v991, %v990
    %v1085 = vsel %vm534, %v1083, 0
    %1087 = vmatpush.bf16.msra.mxu0 0
    %1088 = vmatpush.bf16.msra.mxu0 0
    %1089 = vmatpush.bf16.msra.mxu0 0
    %1090 = vmatpush.bf16.msra.mxu0 0
    %1091 = vmatpush.bf16.msra.mxu0 %v529
    %1092 = vmatpush.bf16.msra.mxu0 %v528
    %1093 = vmatpush.bf16.msra.mxu0 %v527
    %1094 = vmatpush.bf16.msra.mxu0 %v526
    %1095 = vmatmul.bf16.gmra.mxu0 %v1085
    %v1096 = vpop.f32.mrf.mxu0
    %v1097 = vadd.f32 0.0, %v1096
    %v1098 = vpop.f32.mrf.mxu0
    %v1099 = vadd.f32 0.0, %v1098
    %1100 = vdwg.mxu0
    %1101 = vmatpush.bf16.msra.mxu0 0
    %1102 = vmatpush.bf16.msra.mxu0 0
    %1103 = vmatpush.bf16.msra.mxu0 0
    %1104 = vmatpush.bf16.msra.mxu0 0
    %1105 = vmatpush.bf16.msra.mxu0 %v571
    %1106 = vmatpush.bf16.msra.mxu0 %v570
    %1107 = vmatpush.bf16.msra.mxu0 %v569
    %1108 = vmatpush.bf16.msra.mxu0 %v568
    %1109 = vmatmul.bf16.gmra.mxu0 %v1085
    %v1110 = vpop.f32.mrf.mxu0
    %v1111 = vadd.f32 0.0, %v1110
    %v1112 = vpop.f32.mrf.mxu0
    %v1113 = vadd.f32 0.0, %v1112
    %1114 = vdwg.mxu0
    %1115 = vmatpush.bf16.msra.mxu0 0
    %1116 = vmatpush.bf16.msra.mxu0 0
    %1117 = vmatpush.bf16.msra.mxu0 0
    %1118 = vmatpush.bf16.msra.mxu0 0
    %1119 = vmatpush.bf16.msra.mxu0 %v609
    %1120 = vmatpush.bf16.msra.mxu0 %v608
    %1121 = vmatpush.bf16.msra.mxu0 %v607
    %1122 = vmatpush.bf16.msra.mxu0 %v606
    %1123 = vmatmul.bf16.gmra.mxu0 %v1085
    %v1124 = vpop.f32.mrf.mxu0
    %v1125 = vadd.f32 %v450, %v1124
    %v1126 = vpop.f32.mrf.mxu0
    %v1127 = vadd.f32 %v450, %v1126
    %1128 = vdwg.mxu0
    %v1129 = vadd.f32 %v254, %v1097
    %v1130 = vadd.f32 %v256, %v1099
    %v1131 = vxor.u32 %v1129, 2147483648
    %v1132 = vxor.u32 %v1130, 2147483648
    %v1133 = vmul.f32 %v1131, 1.442695
    %v1134 = vpow.pop %v1133
    %v1135 = vmul.f32 %v1132, 1.442695
    %v1136 = vpow.pop %v1135
    %v1137 = vadd.f32 %v1134, 1.0
    %v1138 = vadd.f32 %v1136, 1.0
    %v1139 = vrcp.pop %v1137
    %v1140 = vmul.f32 %v1137, %v1139
    %v1141 = vsub.f32 1.0, %v1140
    %v1142 = vmul.f32 %v1139, %v1141
    %v1143 = vadd.f32 %v1139, %v1142
    %vm1144 = vweird.f32 %v1137
    %vm1145 = vweird.f32 %v1139
    %vm1146 = vmor %vm1144, %vm1145
    %v1147 = vsel %vm1146, %v1139, %v1143
    %v1148 = vand.u32 2147483647, %v1137
    %vm1149 = vcmp.eq.f32.partialorder %v1148, 8.507059e+37
    %v1150 = vand.u32 %v1137, 2147483648
    %v1151 = vor.u32 1.1754944e-38, %v1150
    %v1152 = vsel %vm1149, %v1151, %v1147
    %v1153 = vmul.f32 1.0, %v1152
    %v1154 = vrcp.pop %v1138
    %v1155 = vmul.f32 %v1138, %v1154
    %v1156 = vsub.f32 1.0, %v1155
    %v1157 = vmul.f32 %v1154, %v1156
    %v1158 = vadd.f32 %v1154, %v1157
    %vm1159 = vweird.f32 %v1138
    %vm1160 = vweird.f32 %v1154
    %vm1161 = vmor %vm1159, %vm1160
    %v1162 = vsel %vm1161, %v1154, %v1158
    %v1163 = vand.u32 2147483647, %v1138
    %vm1164 = vcmp.eq.f32.partialorder %v1163, 8.507059e+37
    %v1165 = vand.u32 %v1138, 2147483648
    %v1166 = vor.u32 1.1754944e-38, %v1165
    %v1167 = vsel %vm1164, %v1166, %v1162
    %v1168 = vmul.f32 1.0, %v1167
    %v1169 = vadd.f32 %v297, %v1111
    %v1170 = vadd.f32 %v299, %v1113
    %v1171 = vxor.u32 %v1169, 2147483648
    %v1172 = vxor.u32 %v1170, 2147483648
    %v1173 = vmul.f32 %v1171, 1.442695
    %v1174 = vpow.pop %v1173
    %v1175 = vmul.f32 %v1172, 1.442695
    %v1176 = vpow.pop %v1175
    %v1177 = vadd.f32 %v1174, 1.0
    %v1178 = vadd.f32 %v1176, 1.0
    %v1179 = vrcp.pop %v1177
    %v1180 = vmul.f32 %v1177, %v1179
    %v1181 = vsub.f32 1.0, %v1180
    %v1182 = vmul.f32 %v1179, %v1181
    %v1183 = vadd.f32 %v1179, %v1182
    %vm1184 = vweird.f32 %v1177
    %vm1185 = vweird.f32 %v1179
    %vm1186 = vmor %vm1184, %vm1185
    %v1187 = vsel %vm1186, %v1179, %v1183
    %v1188 = vand.u32 2147483647, %v1177
    %vm1189 = vcmp.eq.f32.partialorder %v1188, 8.507059e+37
    %v1190 = vand.u32 %v1177, 2147483648
    %v1191 = vor.u32 1.1754944e-38, %v1190
    %v1192 = vsel %vm1189, %v1191, %v1187
    %v1193 = vmul.f32 1.0, %v1192
    %v1194 = vrcp.pop %v1178
    %v1195 = vmul.f32 %v1178, %v1194
    %v1196 = vsub.f32 1.0, %v1195
    %v1197 = vmul.f32 %v1194, %v1196
    %v1198 = vadd.f32 %v1194, %v1197
    %vm1199 = vweird.f32 %v1178
    %vm1200 = vweird.f32 %v1194
    %vm1201 = vmor %vm1199, %vm1200
    %v1202 = vsel %vm1201, %v1194, %v1198
    %v1203 = vand.u32 2147483647, %v1178
    %vm1204 = vcmp.eq.f32.partialorder %v1203, 8.507059e+37
    %v1205 = vand.u32 %v1178, 2147483648
    %v1206 = vor.u32 1.1754944e-38, %v1205
    %v1207 = vsel %vm1204, %v1206, %v1202
    %v1208 = vmul.f32 1.0, %v1207
    %v1209 = vmul.f32 %v1153, %v1125
    %v1210 = vmul.f32 %v1168, %v1127
    %v1211 = vadd.f32 %v340, %v1209
    %v1212 = vadd.f32 %v342, %v1210
    %v1213 = vtanh.pop %v1211
    %v1214 = vtanh.pop %v1212
    %v1215 = vsub.f32 1.0, %v1193
    %v1216 = vsub.f32 1.0, %v1208
    %v1217 = vmul.f32 %v1215, %v1213
    %v1218 = vmul.f32 %v1216, %v1214
    %v1219 = vmul.f32 %v1193, %v990
    %v1220 = vmul.f32 %v1208, %v991
    %v1221 = vadd.f32 %v1217, %v1219
    %v1222 = vadd.f32 %v1218, %v1220
    %v1223 = vxor.u32 %v1221, 2147483648
    %v1224 = vxor.u32 %v1222, 2147483648
    %v1225 = vmul.f32 %v1223, 1.442695
    %v1226 = vpow.pop %v1225
    %v1227 = vmul.f32 %v1224, 1.442695
    %v1228 = vpow.pop %v1227
    %v1229 = vadd.f32 %v1226, 1.0
    %v1230 = vadd.f32 %v1228, 1.0
    %v1231 = vrcp.pop %v1229
    %v1232 = vmul.f32 %v1229, %v1231
    %v1233 = vsub.f32 1.0, %v1232
    %v1234 = vmul.f32 %v1231, %v1233
    %v1235 = vadd.f32 %v1231, %v1234
    %vm1236 = vweird.f32 %v1229
    %vm1237 = vweird.f32 %v1231
    %vm1238 = vmor %vm1236, %vm1237
    %v1239 = vsel %vm1238, %v1231, %v1235
    %v1240 = vand.u32 2147483647, %v1229
    %vm1241 = vcmp.eq.f32.partialorder %v1240, 8.507059e+37
    %v1242 = vand.u32 %v1229, 2147483648
    %v1243 = vor.u32 1.1754944e-38, %v1242
    %v1244 = vsel %vm1241, %v1243, %v1239
    %v1245 = vmul.f32 1.0, %v1244
    %v1246 = vrcp.pop %v1230
    %v1247 = vmul.f32 %v1230, %v1246
    %v1248 = vsub.f32 1.0, %v1247
    %v1249 = vmul.f32 %v1246, %v1248
    %v1250 = vadd.f32 %v1246, %v1249
    %vm1251 = vweird.f32 %v1230
    %vm1252 = vweird.f32 %v1246
    %vm1253 = vmor %vm1251, %vm1252
    %v1254 = vsel %vm1253, %v1246, %v1250
    %v1255 = vand.u32 2147483647, %v1230
    %vm1256 = vcmp.eq.f32.partialorder %v1255, 8.507059e+37
    %v1257 = vand.u32 %v1230, 2147483648
    %v1258 = vor.u32 1.1754944e-38, %v1257
    %v1259 = vsel %vm1256, %v1258, %v1254
    %v1260 = vmul.f32 1.0, %v1259
    %v1261 = vpack.c.bf16 %v1260, %v1245
    %s1262 = scalar_lea.vmem [#allocation14], 96
    %v1263 = vld [vmem:[%s1262] sm:$0xf]
    %v1264 = vld [vmem:[%s1262 + $0x4] sm:$0xf]
    %v1265 = vld [vmem:[%s1262 + $0x8] sm:$0xf]
    %v1266 = vld [vmem:[%s1262 + $0xc] sm:$0xf]
    %v1267 = vld [vmem:[%s1262 + $0x10] sm:$0xf]
    %v1268 = vld [vmem:[%s1262 + $0x14] sm:$0xf]
    %v1269 = vld [vmem:[%s1262 + $0x18] sm:$0xf]
    %v1270 = vld [vmem:[%s1262 + $0x1c] sm:$0xf]
    %v1279 = vunpack.c.l.b16 %v1263
    %v1280 = vunpack.c.l.b16 %v1264
    %v1281 = vunpack.c.l.b16 %v1265
    %v1282 = vunpack.c.l.b16 %v1266
    %v1283 = vunpack.c.l.b16 %v1267
    %v1284 = vunpack.c.l.b16 %v1268
    %v1285 = vunpack.c.l.b16 %v1269
    %v1286 = vunpack.c.l.b16 %v1270
    %v1287 = vpack.c.b16 %v1280, %v1279
    %v1288 = vpack.c.b16 %v1282, %v1281
    %v1289 = vpack.c.b16 %v1284, %v1283
    %v1290 = vpack.c.b16 %v1286, %v1285
    %v1296 = vsel %vm534, %v1261, 0
    %1298 = vmatpush.bf16.msra.mxu0 0
    %1299 = vmatpush.bf16.msra.mxu0 0
    %1300 = vmatpush.bf16.msra.mxu0 0
    %1301 = vmatpush.bf16.msra.mxu0 0
    %1302 = vmatpush.bf16.msra.mxu0 %v1290
    %1303 = vmatpush.bf16.msra.mxu0 %v1289
    %1304 = vmatpush.bf16.msra.mxu0 %v1288
    %1305 = vmatpush.bf16.msra.mxu0 %v1287
    %1306 = vmatmul.bf16.gmra.mxu0 %v1296
    %v1307 = vpop.f32.mrf.mxu0
    %v1308 = vadd.f32 0.0, %v1307
    %v1309 = vpop.f32.mrf.mxu0
    %v1310 = vadd.f32 0.0, %v1309
    %1311 = vdwg.mxu0
    %v1312 = vadd.f32 %v1081, %v1308
    %v1313 = vadd.f32 %v1082, %v1310
    %v1314 = vpack.c.bf16 %v1222, %v1221
    %v1316 = vsel %vm534, %v1314, 0
    %1318 = vmatpush.bf16.msra.mxu0 0
    %1319 = vmatpush.bf16.msra.mxu0 0
    %1320 = vmatpush.bf16.msra.mxu0 0
    %1321 = vmatpush.bf16.msra.mxu0 0
    %1322 = vmatpush.bf16.msra.mxu0 %v529
    %1323 = vmatpush.bf16.msra.mxu0 %v528
    %1324 = vmatpush.bf16.msra.mxu0 %v527
    %1325 = vmatpush.bf16.msra.mxu0 %v526
    %1326 = vmatmul.bf16.gmra.mxu0 %v1316
    %v1327 = vpop.f32.mrf.mxu0
    %v1328 = vadd.f32 0.0, %v1327
    %v1329 = vpop.f32.mrf.mxu0
    %v1330 = vadd.f32 0.0, %v1329
    %1331 = vdwg.mxu0
    %1332 = vmatpush.bf16.msra.mxu0 0
    %1333 = vmatpush.bf16.msra.mxu0 0
    %1334 = vmatpush.bf16.msra.mxu0 0
    %1335 = vmatpush.bf16.msra.mxu0 0
    %1336 = vmatpush.bf16.msra.mxu0 %v571
    %1337 = vmatpush.bf16.msra.mxu0 %v570
    %1338 = vmatpush.bf16.msra.mxu0 %v569
    %1339 = vmatpush.bf16.msra.mxu0 %v568
    %1340 = vmatmul.bf16.gmra.mxu0 %v1316
    %v1341 = vpop.f32.mrf.mxu0
    %v1342 = vadd.f32 0.0, %v1341
    %v1343 = vpop.f32.mrf.mxu0
    %v1344 = vadd.f32 0.0, %v1343
    %1345 = vdwg.mxu0
    %1346 = vmatpush.bf16.msra.mxu0 0
    %1347 = vmatpush.bf16.msra.mxu0 0
    %1348 = vmatpush.bf16.msra.mxu0 0
    %1349 = vmatpush.bf16.msra.mxu0 0
    %1350 = vmatpush.bf16.msra.mxu0 %v609
    %1351 = vmatpush.bf16.msra.mxu0 %v608
    %1352 = vmatpush.bf16.msra.mxu0 %v607
    %1353 = vmatpush.bf16.msra.mxu0 %v606
    %1354 = vmatmul.bf16.gmra.mxu0 %v1316
    %v1355 = vpop.f32.mrf.mxu0
    %v1356 = vadd.f32 %v450, %v1355
    %v1357 = vpop.f32.mrf.mxu0
    %v1358 = vadd.f32 %v450, %v1357
    %1359 = vdwg.mxu0
    %v1360 = vadd.f32 %v259, %v1328
    %v1361 = vadd.f32 %v261, %v1330
    %v1362 = vxor.u32 %v1360, 2147483648
    %v1363 = vxor.u32 %v1361, 2147483648
    %v1364 = vmul.f32 %v1362, 1.442695
    %v1365 = vpow.pop %v1364
    %v1366 = vmul.f32 %v1363, 1.442695
    %v1367 = vpow.pop %v1366
    %v1368 = vadd.f32 %v1365, 1.0
    %v1369 = vadd.f32 %v1367, 1.0
    %v1370 = vrcp.pop %v1368
    %v1371 = vmul.f32 %v1368, %v1370
    %v1372 = vsub.f32 1.0, %v1371
    %v1373 = vmul.f32 %v1370, %v1372
    %v1374 = vadd.f32 %v1370, %v1373
    %vm1375 = vweird.f32 %v1368
    %vm1376 = vweird.f32 %v1370
    %vm1377 = vmor %vm1375, %vm1376
    %v1378 = vsel %vm1377, %v1370, %v1374
    %v1379 = vand.u32 2147483647, %v1368
    %vm1380 = vcmp.eq.f32.partialorder %v1379, 8.507059e+37
    %v1381 = vand.u32 %v1368, 2147483648
    %v1382 = vor.u32 1.1754944e-38, %v1381
    %v1383 = vsel %vm1380, %v1382, %v1378
    %v1384 = vmul.f32 1.0, %v1383
    %v1385 = vrcp.pop %v1369
    %v1386 = vmul.f32 %v1369, %v1385
    %v1387 = vsub.f32 1.0, %v1386
    %v1388 = vmul.f32 %v1385, %v1387
    %v1389 = vadd.f32 %v1385, %v1388
    %vm1390 = vweird.f32 %v1369
    %vm1391 = vweird.f32 %v1385
    %vm1392 = vmor %vm1390, %vm1391
    %v1393 = vsel %vm1392, %v1385, %v1389
    %v1394 = vand.u32 2147483647, %v1369
    %vm1395 = vcmp.eq.f32.partialorder %v1394, 8.507059e+37
    %v1396 = vand.u32 %v1369, 2147483648
    %v1397 = vor.u32 1.1754944e-38, %v1396
    %v1398 = vsel %vm1395, %v1397, %v1393
    %v1399 = vmul.f32 1.0, %v1398
    %v1400 = vadd.f32 %v302, %v1342
    %v1401 = vadd.f32 %v304, %v1344
    %v1402 = vxor.u32 %v1400, 2147483648
    %v1403 = vxor.u32 %v1401, 2147483648
    %v1404 = vmul.f32 %v1402, 1.442695
    %v1405 = vpow.pop %v1404
    %v1406 = vmul.f32 %v1403, 1.442695
    %v1407 = vpow.pop %v1406
    %v1408 = vadd.f32 %v1405, 1.0
    %v1409 = vadd.f32 %v1407, 1.0
    %v1410 = vrcp.pop %v1408
    %v1411 = vmul.f32 %v1408, %v1410
    %v1412 = vsub.f32 1.0, %v1411
    %v1413 = vmul.f32 %v1410, %v1412
    %v1414 = vadd.f32 %v1410, %v1413
    %vm1415 = vweird.f32 %v1408
    %vm1416 = vweird.f32 %v1410
    %vm1417 = vmor %vm1415, %vm1416
    %v1418 = vsel %vm1417, %v1410, %v1414
    %v1419 = vand.u32 2147483647, %v1408
    %vm1420 = vcmp.eq.f32.partialorder %v1419, 8.507059e+37
    %v1421 = vand.u32 %v1408, 2147483648
    %v1422 = vor.u32 1.1754944e-38, %v1421
    %v1423 = vsel %vm1420, %v1422, %v1418
    %v1424 = vmul.f32 1.0, %v1423
    %v1425 = vrcp.pop %v1409
    %v1426 = vmul.f32 %v1409, %v1425
    %v1427 = vsub.f32 1.0, %v1426
    %v1428 = vmul.f32 %v1425, %v1427
    %v1429 = vadd.f32 %v1425, %v1428
    %vm1430 = vweird.f32 %v1409
    %vm1431 = vweird.f32 %v1425
    %vm1432 = vmor %vm1430, %vm1431
    %v1433 = vsel %vm1432, %v1425, %v1429
    %v1434 = vand.u32 2147483647, %v1409
    %vm1435 = vcmp.eq.f32.partialorder %v1434, 8.507059e+37
    %v1436 = vand.u32 %v1409, 2147483648
    %v1437 = vor.u32 1.1754944e-38, %v1436
    %v1438 = vsel %vm1435, %v1437, %v1433
    %v1439 = vmul.f32 1.0, %v1438
    %v1440 = vmul.f32 %v1384, %v1356
    %v1441 = vmul.f32 %v1399, %v1358
    %v1442 = vadd.f32 %v345, %v1440
    %v1443 = vadd.f32 %v347, %v1441
    %v1444 = vtanh.pop %v1442
    %v1445 = vtanh.pop %v1443
    %v1446 = vsub.f32 1.0, %v1424
    %v1447 = vsub.f32 1.0, %v1439
    %v1448 = vmul.f32 %v1446, %v1444
    %v1449 = vmul.f32 %v1447, %v1445
    %v1450 = vmul.f32 %v1424, %v1221
    %v1451 = vmul.f32 %v1439, %v1222
    %v1452 = vadd.f32 %v1448, %v1450
    %v1453 = vadd.f32 %v1449, %v1451
    %v1454 = vxor.u32 %v1452, 2147483648
    %v1455 = vxor.u32 %v1453, 2147483648
    %v1456 = vmul.f32 %v1454, 1.442695
    %v1457 = vpow.pop %v1456
    %v1458 = vmul.f32 %v1455, 1.442695
    %v1459 = vpow.pop %v1458
    %v1460 = vadd.f32 %v1457, 1.0
    %v1461 = vadd.f32 %v1459, 1.0
    %v1462 = vrcp.pop %v1460
    %v1463 = vmul.f32 %v1460, %v1462
    %v1464 = vsub.f32 1.0, %v1463
    %v1465 = vmul.f32 %v1462, %v1464
    %v1466 = vadd.f32 %v1462, %v1465
    %vm1467 = vweird.f32 %v1460
    %vm1468 = vweird.f32 %v1462
    %vm1469 = vmor %vm1467, %vm1468
    %v1470 = vsel %vm1469, %v1462, %v1466
    %v1471 = vand.u32 2147483647, %v1460
    %vm1472 = vcmp.eq.f32.partialorder %v1471, 8.507059e+37
    %v1473 = vand.u32 %v1460, 2147483648
    %v1474 = vor.u32 1.1754944e-38, %v1473
    %v1475 = vsel %vm1472, %v1474, %v1470
    %v1476 = vmul.f32 1.0, %v1475
    %v1477 = vrcp.pop %v1461
    %v1478 = vmul.f32 %v1461, %v1477
    %v1479 = vsub.f32 1.0, %v1478
    %v1480 = vmul.f32 %v1477, %v1479
    %v1481 = vadd.f32 %v1477, %v1480
    %vm1482 = vweird.f32 %v1461
    %vm1483 = vweird.f32 %v1477
    %vm1484 = vmor %vm1482, %vm1483
    %v1485 = vsel %vm1484, %v1477, %v1481
    %v1486 = vand.u32 2147483647, %v1461
    %vm1487 = vcmp.eq.f32.partialorder %v1486, 8.507059e+37
    %v1488 = vand.u32 %v1461, 2147483648
    %v1489 = vor.u32 1.1754944e-38, %v1488
    %v1490 = vsel %vm1487, %v1489, %v1485
    %v1491 = vmul.f32 1.0, %v1490
    %v1492 = vpack.c.bf16 %v1491, %v1476
    %s1493 = scalar_lea.vmem [#allocation14], 128
    %v1494 = vld [vmem:[%s1493] sm:$0xf]
    %v1495 = vld [vmem:[%s1493 + $0x4] sm:$0xf]
    %v1496 = vld [vmem:[%s1493 + $0x8] sm:$0xf]
    %v1497 = vld [vmem:[%s1493 + $0xc] sm:$0xf]
    %v1498 = vld [vmem:[%s1493 + $0x10] sm:$0xf]
    %v1499 = vld [vmem:[%s1493 + $0x14] sm:$0xf]
    %v1500 = vld [vmem:[%s1493 + $0x18] sm:$0xf]
    %v1501 = vld [vmem:[%s1493 + $0x1c] sm:$0xf]
    %v1510 = vunpack.c.l.b16 %v1494
    %v1511 = vunpack.c.l.b16 %v1495
    %v1512 = vunpack.c.l.b16 %v1496
    %v1513 = vunpack.c.l.b16 %v1497
    %v1514 = vunpack.c.l.b16 %v1498
    %v1515 = vunpack.c.l.b16 %v1499
    %v1516 = vunpack.c.l.b16 %v1500
    %v1517 = vunpack.c.l.b16 %v1501
    %v1518 = vpack.c.b16 %v1511, %v1510
    %v1519 = vpack.c.b16 %v1513, %v1512
    %v1520 = vpack.c.b16 %v1515, %v1514
    %v1521 = vpack.c.b16 %v1517, %v1516
    %v1527 = vsel %vm534, %v1492, 0
    %1529 = vmatpush.bf16.msra.mxu0 0
    %1530 = vmatpush.bf16.msra.mxu0 0
    %1531 = vmatpush.bf16.msra.mxu0 0
    %1532 = vmatpush.bf16.msra.mxu0 0
    %1533 = vmatpush.bf16.msra.mxu0 %v1521
    %1534 = vmatpush.bf16.msra.mxu0 %v1520
    %1535 = vmatpush.bf16.msra.mxu0 %v1519
    %1536 = vmatpush.bf16.msra.mxu0 %v1518
    %1537 = vmatmul.bf16.gmra.mxu0 %v1527
    %v1538 = vpop.f32.mrf.mxu0
    %v1539 = vadd.f32 0.0, %v1538
    %v1540 = vpop.f32.mrf.mxu0
    %v1541 = vadd.f32 0.0, %v1540
    %1542 = vdwg.mxu0
    %v1543 = vadd.f32 %v1312, %v1539
    %v1544 = vadd.f32 %v1313, %v1541
    %v1545 = vld [vmem:[%s10] sm:$0x1]
    %v1547 = vperm.slane %v1545, 0
    %v1549 = vadd.f32 %v1543, %v1547
    %v1550 = vadd.f32 %v1544, %v1547
    %1551 = vst [vmem:[#allocation16] sm:$0xff] %v1549
    %1552 = vst [vmem:[#allocation16 + $0x8] sm:$0xff] %v1550
    // Predicated region
    $region78: #{tpu_custom_call.1} parent=1 // pred_check
      _
    $region79: #{tpu_custom_call.1} parent=1 // pred_check_branch
      %1554 = sbr.rel (0) target = $region81
    $region80: #{tpu_custom_call.1} parent=1 // pred_region
      %1556 = vsyncadd [#allocation4], 0
      %s1557 = sshll.u32 [#allocation16], 4
      %s1558 = int_to_ptr.vmem [resolvable:$true] %s1557
      %s1559 = sshll.u32 %s11, 4
      %s1560 = int_to_ptr.hbm [resolvable:$true] %s1559
      %1565 = dma.vmem_to_hbm [thread:$0]  %s1558, 256, %s1560, [#allocation4], 128, 128, 8
    $region81: #{tpu_custom_call.1} parent=1 // pred_fallthru
      _
    // Predicated region
    $region82: #{tpu_custom_call.1} parent=1 // pred_check
      _
    $region83: #{tpu_custom_call.1} parent=1 // pred_check_branch
      %1567 = sbr.rel (0) target = $region85
    $region84: #{tpu_custom_call.1} parent=1 // pred_region
      %1569 = dma.done [#allocation4], 256
    $region85: #{tpu_custom_call.1} parent=1 // pred_fallthru
      _
    %1570 = vsyncpa [#allocation3], 1
    %1571 = vsyncpa [#allocation6], 1
    %1572 = vsyncpa [#allocation9], 1
    %1573 = vsyncpa [#allocation12], 1
    %1574 = vsyncpa [#allocation15], 1
    %1575 = vsyncpa [#allocation4], 1

</llo_original>
